<compile_context>
chip_gen: v6e
topology: v6e:2x2x1
jax: 0.10.0
libtpu: 0.0.40
codegen_flags: <defaults>
</compile_context>

<pallas_src>
import jax
import jax.numpy as jnp
from jax.experimental import pallas as pl
from jax.experimental.pallas import tpu as pltpu

PRELU_ALPHA = 0.25  # PyTorch nn.PReLU default init


def _prelu(x):
    return jnp.where(x > 0, x, PRELU_ALPHA * x)


def hdgi_kernel(x_ref, adj_ref, w_rel_ref, b_rel_ref, w_gcn_ref, b_gcn_ref,
                w_bil_ref, b_bil_ref, out_ref):
    """Fused hierarchical-GCN DGI forward for one batch tile.

    x_ref     : (M, F)       pos|neg node features, M = Bt*2N (batch+posneg stacked)
    adj_ref   : (R, M, M)    per-relation block-diag adjacency (batch x pos/neg)
    w_rel_ref : (R, F, H)    per-relation GCN weights
    b_rel_ref : (R, 1, H)    per-relation GCN biases
    w_gcn_ref : (H, H)       final GCN weight
    b_gcn_ref : (1, H)       final GCN bias
    w_bil_ref : (H, H)       nn.Bilinear weight A[0]
    b_bil_ref : (1, 1)       bilinear bias (SMEM scalar)
    out_ref   : (Bt, 2N, 1)  per batch element: [pos scores ; neg scores]
    """
    Bt, twoN, _ = out_ref.shape
    N = twoN // 2
    R = w_rel_ref.shape[0]
    H = w_gcn_ref.shape[0]
    M = x_ref.shape[0]

    # Hoisted (grid-step invariant) loads.
    x2 = x_ref[...]                    # (M, F)
    b_rel = b_rel_ref[...]             # (R, 1, H)
    wg = w_gcn_ref[...]                # (H, H)
    bg = b_gcn_ref[...]                # (1, H)
    wb = w_bil_ref[...]                # (H, H)
    bb = b_bil_ref[0, 0]               # scalar from SMEM
    inv_r = 1.0 / R

    # --- HierarchicalAggrLayer: per-relation GCN, mean aggregation ------------
    acc = jnp.zeros((M, H), jnp.float32)
    for r in range(R):                 # R is small & static
        t = jnp.dot(x2, w_rel_ref[r], preferred_element_type=jnp.float32)   # (M, H)
        h = jnp.dot(adj_ref[r], t, preferred_element_type=jnp.float32)      # (M, H)
        acc = acc + _prelu(h + b_rel[r])
    z_mid = acc * inv_r                # (M, H)

    # --- final GCN on new_adjs[0] (= adjs[0]) ----------------------------------
    u = jnp.dot(z_mid, wg, preferred_element_type=jnp.float32)              # (M, H)
    z = _prelu(jnp.dot(adj_ref[0], u, preferred_element_type=jnp.float32) + bg)

    # --- DGI summary + bilinear discriminator (re-associated) ------------------
    for bi in range(Bt):               # Bt is small & static
        zb = z[bi * twoN:(bi + 1) * twoN, :]                                # (2N, H)
        zp = zb[:N, :]                                                      # (N, H)
        s = jax.nn.sigmoid(jnp.mean(zp, axis=0, keepdims=True))             # (1, H)
        # t_b = A @ s^T  (H, 1): contract dim 1 of both operands.
        t_b = jax.lax.dot_general(wb, s, (((1,), (1,)), ((), ())),
                                  preferred_element_type=jnp.float32)       # (H, 1)
        sc = jnp.dot(zb, t_b, preferred_element_type=jnp.float32)           # (2N, 1)
        out_ref[bi, :, :] = sc + bb


def my_model_forward(fts, adjs_norm, fts_shuf, params, batch_tile=None):
    """fts, fts_shuf: (B, N, F); adjs_norm: (R, B, N, N). Returns logits (B, 2N)."""
    B, N, F = fts.shape
    R = adjs_norm.shape[0]
    H = params["w_gcn"].shape[0]
    f32 = jnp.float32

    if batch_tile is None:
        if B <= 4:
            # Single grid step: at toy sizes the ~0.35us per-step overhead and
            # duplicated weight handling dominate (v5e/v6e have 1 TC; on v7x the
            # per-core work would be sub-us anyway).
            batch_tile = B
        else:
            # Large B: small tiles (block-diag adjacency grows as Bt^2) and
            # >= 2 grid steps so both v7x TensorCores get work.
            batch_tile = next(d for d in (4, 2, 1) if B % d == 0)
    if B % batch_tile != 0:
        batch_tile = 1
    Bt = batch_tile
    num_steps = B // Bt
    M = Bt * 2 * N

    # --- one-time layout prep in the wrapper (tiny arrays, plain XLA ops) -----
    # pos|neg features stacked along nodes then flattened into the matmul M dim.
    x2 = jnp.concatenate([fts, fts_shuf], axis=1).reshape(B * 2 * N, F)     # (B*2N, F)

    # Block-diagonal adjacency over (batch-in-tile x pos/neg) per relation:
    # applying it to the stacked features is exactly per-batch adj @ x.
    adj_steps = jnp.transpose(adjs_norm, (1, 0, 2, 3)).reshape(num_steps, Bt, R, N, N)
    adj_bd = jnp.zeros((num_steps, R, M, M), f32)
    for p in range(Bt):
        for pn in range(2):
            o = (p * 2 + pn) * N
            adj_bd = adj_bd.at[:, :, o:o + N, o:o + N].set(adj_steps[:, p])
    adj_bd = adj_bd.reshape(num_steps * R, M, M)

    in_specs = [
        pl.BlockSpec((M, F), lambda b: (b, 0)),                 # stacked features
        pl.BlockSpec((R, M, M), lambda b: (b, 0, 0)),           # block-diag adjacencies
        pl.BlockSpec((R, F, H), lambda b: (0, 0, 0)),           # relation weights
        pl.BlockSpec((R, 1, H), lambda b: (0, 0, 0)),           # relation biases
        pl.BlockSpec((H, H), lambda b: (0, 0)),                 # final GCN weight
        pl.BlockSpec((1, H), lambda b: (0, 0)),                 # final GCN bias
        pl.BlockSpec((H, H), lambda b: (0, 0)),                 # bilinear weight
        pl.BlockSpec(memory_space=pltpu.MemorySpace.SMEM),      # bilinear bias scalar
    ]
    out_specs = pl.BlockSpec((Bt, 2 * N, 1), lambda b: (b, 0, 0))

    out = pl.pallas_call(
        hdgi_kernel,
        out_shape=jax.ShapeDtypeStruct((B, 2 * N, 1), f32),
        grid=(num_steps,),
        in_specs=in_specs,
        out_specs=out_specs,
        compiler_params=pltpu.CompilerParams(
            dimension_semantics=("parallel",)),
    )(x2, adj_bd, params["w_rel"], params["b_rel"], params["w_gcn"],
      params["b_gcn"], params["w_bil"], params["b_bil"])

    # (B, 2N, 1) -> (B, 2N): pos scores for all nodes, then neg scores.
    return out.reshape(B, 2 * N)


def my_model_reference(fts, adjs_norm, fts_shuf, params):
    """Pure-JAX reference of the same forward pass (module semantics)."""
    R = adjs_norm.shape[0]

    def embed(x):
        h = 0.0
        for r in range(R):
            pre = jnp.einsum("bij,bjh->bih", adjs_norm[r], x @ params["w_rel"][r]) \
                  + params["b_rel"][r]
            h = h + _prelu(pre)
        h = h / R
        pre = jnp.einsum("bij,bjh->bih", adjs_norm[0], h @ params["w_gcn"]) + params["b_gcn"]
        return _prelu(pre)

    zp = embed(fts)
    zn = embed(fts_shuf)
    s = jax.nn.sigmoid(jnp.mean(zp, axis=1, keepdims=True))          # (B, 1, H)
    sc1 = jnp.sum((zp @ params["w_bil"]) * s, axis=2) + params["b_bil"][0, 0]
    sc2 = jnp.sum((zn @ params["w_bil"]) * s, axis=2) + params["b_bil"][0, 0]
    return jnp.concatenate([sc1, sc2], axis=1)


if __name__ == "__main__":
    # small shapes consistent with the module
    B, N, F, H, R = 2, 16, 32, 32, 3

    key = jax.random.PRNGKey(0)
    ks = jax.random.split(key, 10)

    fts = jax.random.normal(ks[0], (B, N, F), jnp.float32)
    # shuffled-node negative features (row permutation per DGI)
    perm = jax.random.permutation(ks[1], N)
    fts_shuf = fts[:, perm, :]
    # normalized dense adjacencies (row-stochastic), stacked over relations
    adj_raw = jax.random.uniform(ks[2], (R, B, N, N), jnp.float32)
    adjs_norm = adj_raw / jnp.sum(adj_raw, axis=-1, keepdims=True)

    scale = 0.1
    params = {
        "w_rel": scale * jax.random.normal(ks[3], (R, F, H), jnp.float32),
        "b_rel": scale * jax.random.normal(ks[4], (R, 1, H), jnp.float32),
        "w_gcn": scale * jax.random.normal(ks[5], (H, H), jnp.float32),
        "b_gcn": scale * jax.random.normal(ks[6], (1, H), jnp.float32),
        "w_bil": scale * jax.random.normal(ks[7], (H, H), jnp.float32),
        "b_bil": scale * jax.random.normal(ks[8], (1, 1), jnp.float32),
    }

    logits = my_model_forward(fts, adjs_norm, fts_shuf, params)
    logits = jax.block_until_ready(logits)

    ref = my_model_reference(fts, adjs_norm, fts_shuf, params)
    assert logits.shape == (B, 2 * N), logits.shape
    # small extra slack vs. f32: the bilinear score is computed via the
    # re-associated z @ (A @ s^T) identity.
    assert jnp.allclose(logits, ref, atol=2e-4, rtol=2e-4), (
        float(jnp.max(jnp.abs(logits - ref))))

    print("KERNEL_OK")
</pallas_src>

<mosaic_0001>
module attributes {stable_mosaic.version = 11 : i64} {
  func.func @hdgi_kernel(%arg0: i32, %arg1: memref<64x32xf32, #tpu.memory_space<vmem>>, %arg2: memref<3x64x64xf32, #tpu.memory_space<vmem>>, %arg3: memref<3x32x32xf32, #tpu.memory_space<vmem>>, %arg4: memref<3x1x32xf32, #tpu.memory_space<vmem>>, %arg5: memref<32x32xf32, #tpu.memory_space<vmem>>, %arg6: memref<1x32xf32, #tpu.memory_space<vmem>>, %arg7: memref<32x32xf32, #tpu.memory_space<vmem>>, %arg8: memref<1x1xf32, #tpu.memory_space<smem>>, %arg9: memref<2x32x1xf32, #tpu.memory_space<vmem>>) attributes {dimension_semantics = [#tpu.dimension_semantics<parallel>], iteration_bounds = array<i64: 1>, scalar_prefetch = 0 : i64, scratch_operands = 0 : i64, tpu.core_type = #tpu.core_type<tc>, window_params = [{transform_indices = @transform_0, window_bounds = array<i64: 64, 32>}, {transform_indices = @transform_1, window_bounds = array<i64: 3, 64, 64>}, {pipeline_mode = #tpu.pipeline_mode<synchronous>, transform_indices = @transform_2, window_bounds = array<i64: 3, 32, 32>}, {pipeline_mode = #tpu.pipeline_mode<synchronous>, transform_indices = @transform_3, window_bounds = array<i64: 3, 1, 32>}, {pipeline_mode = #tpu.pipeline_mode<synchronous>, transform_indices = @transform_4, window_bounds = array<i64: 32, 32>}, {pipeline_mode = #tpu.pipeline_mode<synchronous>, transform_indices = @transform_5, window_bounds = array<i64: 1, 32>}, {pipeline_mode = #tpu.pipeline_mode<synchronous>, transform_indices = @transform_6, window_bounds = array<i64: 32, 32>}, {transform_indices = @transform_7, window_bounds = array<i64: 1, 1>}, {transform_indices = @transform_8, window_bounds = array<i64: 2, 32, 1>}]} {
    %c0 = arith.constant 0 : index
    %c0_0 = arith.constant 0 : index
    %0 = vector.load %arg1[%c0, %c0_0] : memref<64x32xf32, #tpu.memory_space<vmem>>, vector<64x32xf32>
    %c0_1 = arith.constant 0 : index
    %c0_2 = arith.constant 0 : index
    %c0_3 = arith.constant 0 : index
    %1 = vector.load %arg4[%c0_1, %c0_2, %c0_3] : memref<3x1x32xf32, #tpu.memory_space<vmem>>, vector<3x1x32xf32>
    %c0_4 = arith.constant 0 : index
    %c0_5 = arith.constant 0 : index
    %2 = vector.load %arg5[%c0_4, %c0_5] : memref<32x32xf32, #tpu.memory_space<vmem>>, vector<32x32xf32>
    %c0_6 = arith.constant 0 : index
    %c0_7 = arith.constant 0 : index
    %3 = vector.load %arg6[%c0_6, %c0_7] : memref<1x32xf32, #tpu.memory_space<vmem>>, vector<1x32xf32>
    %c0_8 = arith.constant 0 : index
    %c0_9 = arith.constant 0 : index
    %4 = vector.load %arg7[%c0_8, %c0_9] : memref<32x32xf32, #tpu.memory_space<vmem>>, vector<32x32xf32>
    %c0_10 = arith.constant 0 : index
    %c0_11 = arith.constant 0 : index
    %5 = memref.load %arg8[%c0_10, %c0_11] : memref<1x1xf32, #tpu.memory_space<smem>>
    %cst = arith.constant 0.000000e+00 : f32
    %6 = vector.broadcast %cst : f32 to vector<64x32xf32>
    %c0_12 = arith.constant 0 : index
    %c0_13 = arith.constant 0 : index
    %c0_14 = arith.constant 0 : index
    %7 = vector.load %arg3[%c0_12, %c0_13, %c0_14] : memref<3x32x32xf32, #tpu.memory_space<vmem>>, vector<1x32x32xf32>
    %8 = vector.shape_cast %7 : vector<1x32x32xf32> to vector<32x32xf32>
    %cst_15 = arith.constant dense<0.000000e+00> : vector<64x32xf32>
    %9 = tpu.matmul %0, %8, %cst_15 {dimension_numbers = #tpu.dot_dimension_numbers<[1], [0], [0], [1], [0, 0, 1, 1], [], []>} : vector<64x32xf32>, vector<32x32xf32>, vector<64x32xf32> -> vector<64x32xf32>
    %c0_16 = arith.constant 0 : index
    %c0_17 = arith.constant 0 : index
    %c0_18 = arith.constant 0 : index
    %10 = vector.load %arg2[%c0_16, %c0_17, %c0_18] : memref<3x64x64xf32, #tpu.memory_space<vmem>>, vector<1x64x64xf32>
    %11 = vector.shape_cast %10 : vector<1x64x64xf32> to vector<64x64xf32>
    %cst_19 = arith.constant dense<0.000000e+00> : vector<64x32xf32>
    %12 = tpu.matmul %11, %9, %cst_19 {dimension_numbers = #tpu.dot_dimension_numbers<[1], [0], [0], [1], [0, 0, 1, 1], [], []>} : vector<64x64xf32>, vector<64x32xf32>, vector<64x32xf32> -> vector<64x32xf32>
    %13 = vector.extract_strided_slice %1 {offsets = [0, 0, 0], sizes = [1, 1, 32], strides = [1, 1, 1]} : vector<3x1x32xf32> to vector<1x1x32xf32>
    %14 = vector.shape_cast %13 : vector<1x1x32xf32> to vector<1x32xf32>
    %15 = vector.broadcast %14 : vector<1x32xf32> to vector<64x32xf32>
    %16 = arith.addf %12, %15 : vector<64x32xf32>
    %cst_20 = arith.constant 0.000000e+00 : f32
    %17 = vector.broadcast %cst_20 : f32 to vector<64x32xf32>
    %18 = arith.cmpf ogt, %16, %17 : vector<64x32xf32>
    %cst_21 = arith.constant 2.500000e-01 : f32
    %19 = vector.broadcast %cst_21 : f32 to vector<64x32xf32>
    %20 = arith.mulf %19, %16 : vector<64x32xf32>
    %21 = arith.select %18, %16, %20 : vector<64x32xi1>, vector<64x32xf32>
    %22 = arith.addf %6, %21 : vector<64x32xf32>
    %c1 = arith.constant 1 : index
    %c0_22 = arith.constant 0 : index
    %c0_23 = arith.constant 0 : index
    %23 = vector.load %arg3[%c1, %c0_22, %c0_23] : memref<3x32x32xf32, #tpu.memory_space<vmem>>, vector<1x32x32xf32>
    %24 = vector.shape_cast %23 : vector<1x32x32xf32> to vector<32x32xf32>
    %cst_24 = arith.constant dense<0.000000e+00> : vector<64x32xf32>
    %25 = tpu.matmul %0, %24, %cst_24 {dimension_numbers = #tpu.dot_dimension_numbers<[1], [0], [0], [1], [0, 0, 1, 1], [], []>} : vector<64x32xf32>, vector<32x32xf32>, vector<64x32xf32> -> vector<64x32xf32>
    %c1_25 = arith.constant 1 : index
    %c0_26 = arith.constant 0 : index
    %c0_27 = arith.constant 0 : index
    %26 = vector.load %arg2[%c1_25, %c0_26, %c0_27] : memref<3x64x64xf32, #tpu.memory_space<vmem>>, vector<1x64x64xf32>
    %27 = vector.shape_cast %26 : vector<1x64x64xf32> to vector<64x64xf32>
    %cst_28 = arith.constant dense<0.000000e+00> : vector<64x32xf32>
    %28 = tpu.matmul %27, %25, %cst_28 {dimension_numbers = #tpu.dot_dimension_numbers<[1], [0], [0], [1], [0, 0, 1, 1], [], []>} : vector<64x64xf32>, vector<64x32xf32>, vector<64x32xf32> -> vector<64x32xf32>
    %29 = vector.extract_strided_slice %1 {offsets = [1, 0, 0], sizes = [1, 1, 32], strides = [1, 1, 1]} : vector<3x1x32xf32> to vector<1x1x32xf32>
    %30 = vector.shape_cast %29 : vector<1x1x32xf32> to vector<1x32xf32>
    %31 = vector.broadcast %30 : vector<1x32xf32> to vector<64x32xf32>
    %32 = arith.addf %28, %31 : vector<64x32xf32>
    %cst_29 = arith.constant 0.000000e+00 : f32
    %33 = vector.broadcast %cst_29 : f32 to vector<64x32xf32>
    %34 = arith.cmpf ogt, %32, %33 : vector<64x32xf32>
    %cst_30 = arith.constant 2.500000e-01 : f32
    %35 = vector.broadcast %cst_30 : f32 to vector<64x32xf32>
    %36 = arith.mulf %35, %32 : vector<64x32xf32>
    %37 = arith.select %34, %32, %36 : vector<64x32xi1>, vector<64x32xf32>
    %38 = arith.addf %22, %37 : vector<64x32xf32>
    %c2 = arith.constant 2 : index
    %c0_31 = arith.constant 0 : index
    %c0_32 = arith.constant 0 : index
    %39 = vector.load %arg3[%c2, %c0_31, %c0_32] : memref<3x32x32xf32, #tpu.memory_space<vmem>>, vector<1x32x32xf32>
    %40 = vector.shape_cast %39 : vector<1x32x32xf32> to vector<32x32xf32>
    %cst_33 = arith.constant dense<0.000000e+00> : vector<64x32xf32>
    %41 = tpu.matmul %0, %40, %cst_33 {dimension_numbers = #tpu.dot_dimension_numbers<[1], [0], [0], [1], [0, 0, 1, 1], [], []>} : vector<64x32xf32>, vector<32x32xf32>, vector<64x32xf32> -> vector<64x32xf32>
    %c2_34 = arith.constant 2 : index
    %c0_35 = arith.constant 0 : index
    %c0_36 = arith.constant 0 : index
    %42 = vector.load %arg2[%c2_34, %c0_35, %c0_36] : memref<3x64x64xf32, #tpu.memory_space<vmem>>, vector<1x64x64xf32>
    %43 = vector.shape_cast %42 : vector<1x64x64xf32> to vector<64x64xf32>
    %cst_37 = arith.constant dense<0.000000e+00> : vector<64x32xf32>
    %44 = tpu.matmul %43, %41, %cst_37 {dimension_numbers = #tpu.dot_dimension_numbers<[1], [0], [0], [1], [0, 0, 1, 1], [], []>} : vector<64x64xf32>, vector<64x32xf32>, vector<64x32xf32> -> vector<64x32xf32>
    %45 = vector.extract_strided_slice %1 {offsets = [2, 0, 0], sizes = [1, 1, 32], strides = [1, 1, 1]} : vector<3x1x32xf32> to vector<1x1x32xf32>
    %46 = vector.shape_cast %45 : vector<1x1x32xf32> to vector<1x32xf32>
    %47 = vector.broadcast %46 : vector<1x32xf32> to vector<64x32xf32>
    %48 = arith.addf %44, %47 : vector<64x32xf32>
    %cst_38 = arith.constant 0.000000e+00 : f32
    %49 = vector.broadcast %cst_38 : f32 to vector<64x32xf32>
    %50 = arith.cmpf ogt, %48, %49 : vector<64x32xf32>
    %cst_39 = arith.constant 2.500000e-01 : f32
    %51 = vector.broadcast %cst_39 : f32 to vector<64x32xf32>
    %52 = arith.mulf %51, %48 : vector<64x32xf32>
    %53 = arith.select %50, %48, %52 : vector<64x32xi1>, vector<64x32xf32>
    %54 = arith.addf %38, %53 : vector<64x32xf32>
    %cst_40 = arith.constant 0.333333343 : f32
    %55 = vector.broadcast %cst_40 : f32 to vector<64x32xf32>
    %56 = arith.mulf %54, %55 : vector<64x32xf32>
    %cst_41 = arith.constant dense<0.000000e+00> : vector<64x32xf32>
    %57 = tpu.matmul %56, %2, %cst_41 {dimension_numbers = #tpu.dot_dimension_numbers<[1], [0], [0], [1], [0, 0, 1, 1], [], []>} : vector<64x32xf32>, vector<32x32xf32>, vector<64x32xf32> -> vector<64x32xf32>
    %c0_42 = arith.constant 0 : index
    %c0_43 = arith.constant 0 : index
    %c0_44 = arith.constant 0 : index
    %58 = vector.load %arg2[%c0_42, %c0_43, %c0_44] : memref<3x64x64xf32, #tpu.memory_space<vmem>>, vector<1x64x64xf32>
    %59 = vector.shape_cast %58 : vector<1x64x64xf32> to vector<64x64xf32>
    %cst_45 = arith.constant dense<0.000000e+00> : vector<64x32xf32>
    %60 = tpu.matmul %59, %57, %cst_45 {dimension_numbers = #tpu.dot_dimension_numbers<[1], [0], [0], [1], [0, 0, 1, 1], [], []>} : vector<64x64xf32>, vector<64x32xf32>, vector<64x32xf32> -> vector<64x32xf32>
    %61 = vector.broadcast %3 : vector<1x32xf32> to vector<64x32xf32>
    %62 = arith.addf %60, %61 : vector<64x32xf32>
    %cst_46 = arith.constant 0.000000e+00 : f32
    %63 = vector.broadcast %cst_46 : f32 to vector<64x32xf32>
    %64 = arith.cmpf ogt, %62, %63 : vector<64x32xf32>
    %cst_47 = arith.constant 2.500000e-01 : f32
    %65 = vector.broadcast %cst_47 : f32 to vector<64x32xf32>
    %66 = arith.mulf %65, %62 : vector<64x32xf32>
    %67 = arith.select %64, %62, %66 : vector<64x32xi1>, vector<64x32xf32>
    %68 = vector.extract_strided_slice %67 {offsets = [0, 0], sizes = [32, 32], strides = [1, 1]} : vector<64x32xf32> to vector<32x32xf32>
    %69 = vector.extract_strided_slice %68 {offsets = [0, 0], sizes = [16, 32], strides = [1, 1]} : vector<32x32xf32> to vector<16x32xf32>
    %cst_48 = arith.constant dense<0.000000e+00> : vector<32xf32>
    %70 = vector.multi_reduction <add>, %69, %cst_48 [0] : vector<16x32xf32> to vector<32xf32>
    %71 = vector.shape_cast %70 : vector<32xf32> to vector<1x32xf32>
    %cst_49 = arith.constant 1.600000e+01 : f32
    %72 = vector.broadcast %cst_49 : f32 to vector<1x32xf32>
    %73 = arith.divf %71, %72 : vector<1x32xf32>
    %74 = arith.negf %73 : vector<1x32xf32>
    %75 = math.exp %74 : vector<1x32xf32>
    %cst_50 = arith.constant 1.000000e+00 : f32
    %76 = vector.broadcast %cst_50 : f32 to vector<1x32xf32>
    %77 = arith.addf %76, %75 : vector<1x32xf32>
    %78 = arith.divf %76, %77 : vector<1x32xf32>
    %cst_51 = arith.constant dense<0.000000e+00> : vector<32x1xf32>
    %79 = tpu.matmul %4, %78, %cst_51 {dimension_numbers = #tpu.dot_dimension_numbers<[1], [1], [0], [0], [0, 0, 1, 0], [], []>} : vector<32x32xf32>, vector<1x32xf32>, vector<32x1xf32> -> vector<32x1xf32>
    %cst_52 = arith.constant dense<0.000000e+00> : vector<32x1xf32>
    %80 = tpu.matmul %68, %79, %cst_52 {dimension_numbers = #tpu.dot_dimension_numbers<[1], [0], [0], [1], [0, 0, 1, 1], [], []>} : vector<32x32xf32>, vector<32x1xf32>, vector<32x1xf32> -> vector<32x1xf32>
    %81 = vector.broadcast %5 : f32 to vector<32x1xf32>
    %82 = arith.addf %80, %81 : vector<32x1xf32>
    %c0_53 = arith.constant 0 : index
    %c0_54 = arith.constant 0 : index
    %c0_55 = arith.constant 0 : index
    %83 = vector.load %arg9[%c0_53, %c0_54, %c0_55] : memref<2x32x1xf32, #tpu.memory_space<vmem>>, vector<1x32x1xf32>
    %84 = vector.shape_cast %83 : vector<1x32x1xf32> to vector<32x1xf32>
    %85 = vector.shape_cast %82 : vector<32x1xf32> to vector<1x32x1xf32>
    tpu.vector_store %arg9[%c0_53, %c0_54, %c0_55], %85 {strides = array<i32>} : memref<2x32x1xf32, #tpu.memory_space<vmem>>, vector<1x32x1xf32>,
    %86 = vector.extract_strided_slice %67 {offsets = [32, 0], sizes = [32, 32], strides = [1, 1]} : vector<64x32xf32> to vector<32x32xf32>
    %87 = vector.extract_strided_slice %86 {offsets = [0, 0], sizes = [16, 32], strides = [1, 1]} : vector<32x32xf32> to vector<16x32xf32>
    %cst_56 = arith.constant dense<0.000000e+00> : vector<32xf32>
    %88 = vector.multi_reduction <add>, %87, %cst_56 [0] : vector<16x32xf32> to vector<32xf32>
    %89 = vector.shape_cast %88 : vector<32xf32> to vector<1x32xf32>
    %cst_57 = arith.constant 1.600000e+01 : f32
    %90 = vector.broadcast %cst_57 : f32 to vector<1x32xf32>
    %91 = arith.divf %89, %90 : vector<1x32xf32>
    %92 = arith.negf %91 : vector<1x32xf32>
    %93 = math.exp %92 : vector<1x32xf32>
    %cst_58 = arith.constant 1.000000e+00 : f32
    %94 = vector.broadcast %cst_58 : f32 to vector<1x32xf32>
    %95 = arith.addf %94, %93 : vector<1x32xf32>
    %96 = arith.divf %94, %95 : vector<1x32xf32>
    %cst_59 = arith.constant dense<0.000000e+00> : vector<32x1xf32>
    %97 = tpu.matmul %4, %96, %cst_59 {dimension_numbers = #tpu.dot_dimension_numbers<[1], [1], [0], [0], [0, 0, 1, 0], [], []>} : vector<32x32xf32>, vector<1x32xf32>, vector<32x1xf32> -> vector<32x1xf32>
    %cst_60 = arith.constant dense<0.000000e+00> : vector<32x1xf32>
    %98 = tpu.matmul %86, %97, %cst_60 {dimension_numbers = #tpu.dot_dimension_numbers<[1], [0], [0], [1], [0, 0, 1, 1], [], []>} : vector<32x32xf32>, vector<32x1xf32>, vector<32x1xf32> -> vector<32x1xf32>
    %99 = vector.broadcast %5 : f32 to vector<32x1xf32>
    %100 = arith.addf %98, %99 : vector<32x1xf32>
    %c1_61 = arith.constant 1 : index
    %c0_62 = arith.constant 0 : index
    %c0_63 = arith.constant 0 : index
    %101 = vector.load %arg9[%c1_61, %c0_62, %c0_63] : memref<2x32x1xf32, #tpu.memory_space<vmem>>, vector<1x32x1xf32>
    %102 = vector.shape_cast %101 : vector<1x32x1xf32> to vector<32x1xf32>
    %103 = vector.shape_cast %100 : vector<32x1xf32> to vector<1x32x1xf32>
    tpu.vector_store %arg9[%c1_61, %c0_62, %c0_63], %103 {strides = array<i32>} : memref<2x32x1xf32, #tpu.memory_space<vmem>>, vector<1x32x1xf32>,
    return
  }
  func.func @transform_0(%arg0: i32) -> (i32, i32) {
    %c0_i32 = arith.constant 0 : i32
    %c0_i32_0 = arith.constant 0 : i32
    return %arg0, %c0_i32 : i32, i32
  }
  func.func @transform_1(%arg0: i32) -> (i32, i32, i32) {
    %c0_i32 = arith.constant 0 : i32
    %c0_i32_0 = arith.constant 0 : i32
    %c0_i32_1 = arith.constant 0 : i32
    return %arg0, %c0_i32, %c0_i32_0 : i32, i32, i32
  }
  func.func @transform_2(%arg0: i32) -> (i32, i32, i32) {
    %c0_i32 = arith.constant 0 : i32
    %c0_i32_0 = arith.constant 0 : i32
    %c0_i32_1 = arith.constant 0 : i32
    %c0_i32_2 = arith.constant 0 : i32
    return %c0_i32, %c0_i32_0, %c0_i32_1 : i32, i32, i32
  }
  func.func @transform_3(%arg0: i32) -> (i32, i32, i32) {
    %c0_i32 = arith.constant 0 : i32
    %c0_i32_0 = arith.constant 0 : i32
    %c0_i32_1 = arith.constant 0 : i32
    %c0_i32_2 = arith.constant 0 : i32
    return %c0_i32, %c0_i32_0, %c0_i32_1 : i32, i32, i32
  }
  func.func @transform_4(%arg0: i32) -> (i32, i32) {
    %c0_i32 = arith.constant 0 : i32
    %c0_i32_0 = arith.constant 0 : i32
    %c0_i32_1 = arith.constant 0 : i32
    return %c0_i32, %c0_i32_0 : i32, i32
  }
  func.func @transform_5(%arg0: i32) -> (i32, i32) {
    %c0_i32 = arith.constant 0 : i32
    %c0_i32_0 = arith.constant 0 : i32
    %c0_i32_1 = arith.constant 0 : i32
    return %c0_i32, %c0_i32_0 : i32, i32
  }
  func.func @transform_6(%arg0: i32) -> (i32, i32) {
    %c0_i32 = arith.constant 0 : i32
    %c0_i32_0 = arith.constant 0 : i32
    %c0_i32_1 = arith.constant 0 : i32
    return %c0_i32, %c0_i32_0 : i32, i32
  }
  func.func @transform_7(%arg0: i32) -> (i32, i32) {
    %c0_i32 = arith.constant 0 : i32
    %c0_i32_0 = arith.constant 0 : i32
    %c0_i32_1 = arith.constant 0 : i32
    return %c0_i32, %c0_i32_0 : i32, i32
  }
  func.func @transform_8(%arg0: i32) -> (i32, i32, i32) {
    %c0_i32 = arith.constant 0 : i32
    %c0_i32_0 = arith.constant 0 : i32
    %c0_i32_1 = arith.constant 0 : i32
    return %arg0, %c0_i32, %c0_i32_0 : i32, i32, i32
  }
}

</mosaic_0001>

<llo_original>
// kernel: tpu_custom_call.1
$region0: #{tpu_custom_call.1}
  #allocation0 [shape = 'u32[]', space=smem, size = 0x4, offset = 0x4, fixed_abs, tag = 'smem constant byte address 0x4 - core index']
  #allocation1 [shape = 'u32[144,128]{1,0:T(1,128)}', space=vmem, size = 0x12000, scoped, tag = 'internal scratch']
  #allocation2 [shape = 'f32[1,1]{1,0:T(1,128)S(6)}', space=smem, size = 0x200, scoped, tag = 'scoped memory for tpu_custom_call.1']
  %s0 = inlined_call_operand.vmem [shape: f32[64,32], index: 0, kind: input, shape index: {}]
  %s1 = inlined_call_operand.hbm [shape: f32[3,64,64], index: 1, kind: input, shape index: {}]
  %s2 = inlined_call_operand.vmem [shape: f32[3,32,32], index: 2, kind: input, shape index: {}]
  %s3 = inlined_call_operand.vmem [shape: f32[3,1,32], index: 3, kind: input, shape index: {}]
  %s4 = inlined_call_operand.hbm [shape: f32[32,32], index: 4, kind: input, shape index: {}]
  %s5 = inlined_call_operand.vmem [shape: f32[1,32], index: 5, kind: input, shape index: {}]
  %s6 = inlined_call_operand.hbm [shape: f32[32,32], index: 6, kind: input, shape index: {}]
  %s7 = inlined_call_operand.<no memory space> [shape: f32[1,1], index: 7, kind: input, shape index: {}]
  %s8 = inlined_call_operand.vmem [shape: f32[2,32,1], index: 8, kind: output, shape index: {}]
  %s9 = sld [smem:[#allocation0]]
  $region54: #{tpu_custom_call.1} parent=0
    _
  %s11 = ssub.s32 1, %s9
  %s12 = scalar_select 0, %s11, %s9
  %13 = sst [smem:[#allocation2]] %s7
  $region1: #{tpu_custom_call.1} parent=0
    #allocation3 [shape = 'u8[98304]{0}', space=vmem, size = 0x18000, scoped, tag = 'input window, operand 1, single buffered']
    #allocation4 [shape = 's32[1]{0}', space=sflag, size = 0x4, scoped, tag = 'scoped memory for tpu_custom_call.1']
    #allocation5 [shape = 'u8[16384]{0}', space=vmem, size = 0x4000, scoped, tag = 'input window, operand 4, single buffered']
    #allocation6 [shape = 's32[1]{0}', space=sflag, size = 0x4, scoped, tag = 'scoped memory for tpu_custom_call.1']
    #allocation7 [shape = 'u8[16384]{0}', space=vmem, size = 0x4000, scoped, tag = 'input window, operand 6, single buffered']
    %14 = vsyncpa [#allocation4], 0
    %15 = vsyncpa [#allocation6], 0
    // Predicated region
    $region2: #{tpu_custom_call.1} parent=1 // pred_check
      _
    $region3: #{tpu_custom_call.1} parent=1 // pred_check_branch
      %17 = sbr.rel (0) target = $region5
    $region4: #{tpu_custom_call.1} parent=1 // pred_region
      _
    $region5: #{tpu_custom_call.1} parent=1 // pred_fallthru
      _
    // Predicated region
    $region6: #{tpu_custom_call.1} parent=1 // pred_check
      _
    $region7: #{tpu_custom_call.1} parent=1 // pred_check_branch
      %19 = sbr.rel (0) target = $region9
    $region8: #{tpu_custom_call.1} parent=1 // pred_region
      %s21 = ssub.s32 3072, 3072
      %22 = vsyncadd [#allocation4], %s21
      %s23 = sshll.u32 [#allocation3], 4
      %s24 = int_to_ptr.vmem [resolvable:$true] %s23
      %29 = dma.hbm_to_vmem [thread:$0]  %s1, 3072, %s24, [#allocation4], 128, 128, 8
    $region9: #{tpu_custom_call.1} parent=1 // pred_fallthru
      _
    // Predicated region
    $region10: #{tpu_custom_call.1} parent=1 // pred_check
      _
    $region11: #{tpu_custom_call.1} parent=1 // pred_check_branch
      %31 = sbr.rel (0) target = $region13
    $region12: #{tpu_custom_call.1} parent=1 // pred_region
      _
    $region13: #{tpu_custom_call.1} parent=1 // pred_fallthru
      _
    // Predicated region
    $region14: #{tpu_custom_call.1} parent=1 // pred_check
      _
    $region15: #{tpu_custom_call.1} parent=1 // pred_check_branch
      %33 = sbr.rel (0) target = $region17
    $region16: #{tpu_custom_call.1} parent=1 // pred_region
      _
    $region17: #{tpu_custom_call.1} parent=1 // pred_fallthru
      _
    // Predicated region
    $region18: #{tpu_custom_call.1} parent=1 // pred_check
      _
    $region19: #{tpu_custom_call.1} parent=1 // pred_check_branch
      %35 = sbr.rel (0) target = $region21
    $region20: #{tpu_custom_call.1} parent=1 // pred_region
      %s37 = ssub.s32 512, 512
      %38 = vsyncadd [#allocation6], %s37
      %s39 = sshll.u32 [#allocation5], 4
      %s40 = int_to_ptr.vmem [resolvable:$true] %s39
      %45 = dma.hbm_to_vmem [thread:$0]  %s4, 512, %s40, [#allocation6], 128, 128, 8
    $region21: #{tpu_custom_call.1} parent=1 // pred_fallthru
      _
    // Predicated region
    $region22: #{tpu_custom_call.1} parent=1 // pred_check
      _
    $region23: #{tpu_custom_call.1} parent=1 // pred_check_branch
      %47 = sbr.rel (0) target = $region25
    $region24: #{tpu_custom_call.1} parent=1 // pred_region
      _
    $region25: #{tpu_custom_call.1} parent=1 // pred_fallthru
      _
    // Predicated region
    $region26: #{tpu_custom_call.1} parent=1 // pred_check
      _
    $region27: #{tpu_custom_call.1} parent=1 // pred_check_branch
      %49 = sbr.rel (0) target = $region29
    $region28: #{tpu_custom_call.1} parent=1 // pred_region
      %s51 = ssub.s32 512, 512
      %52 = vsyncadd [#allocation6], %s51
      %s53 = sshll.u32 [#allocation7], 4
      %s54 = int_to_ptr.vmem [resolvable:$true] %s53
      %59 = dma.hbm_to_vmem [thread:$0]  %s6, 512, %s54, [#allocation6], 128, 128, 8
    $region29: #{tpu_custom_call.1} parent=1 // pred_fallthru
      _
    // Predicated region
    $region30: #{tpu_custom_call.1} parent=1 // pred_check
      _
    $region31: #{tpu_custom_call.1} parent=1 // pred_check_branch
      %61 = sbr.rel (0) target = $region33
    $region32: #{tpu_custom_call.1} parent=1 // pred_region
      _
    $region33: #{tpu_custom_call.1} parent=1 // pred_fallthru
      _
    // Predicated region
    $region34: #{tpu_custom_call.1} parent=1 // pred_check
      _
    $region35: #{tpu_custom_call.1} parent=1 // pred_check_branch
      %63 = sbr.rel (0) target = $region37
    $region36: #{tpu_custom_call.1} parent=1 // pred_region
      %64 = dma.done [#allocation4], 3072
    $region37: #{tpu_custom_call.1} parent=1 // pred_fallthru
      _
    // Predicated region
    $region38: #{tpu_custom_call.1} parent=1 // pred_check
      _
    $region39: #{tpu_custom_call.1} parent=1 // pred_check_branch
      %66 = sbr.rel (0) target = $region41
    $region40: #{tpu_custom_call.1} parent=1 // pred_region
      %67 = dma.done [#allocation6], 512
    $region41: #{tpu_custom_call.1} parent=1 // pred_fallthru
      _
    // Predicated region
    $region42: #{tpu_custom_call.1} parent=1 // pred_check
      _
    $region43: #{tpu_custom_call.1} parent=1 // pred_check_branch
      %69 = sbr.rel (0) target = $region45
    $region44: #{tpu_custom_call.1} parent=1 // pred_region
      %70 = dma.done [#allocation6], 512
    $region45: #{tpu_custom_call.1} parent=1 // pred_fallthru
      _
    %v71 = vld [vmem:[%s0] sm:$0xff]
    %v72 = vld [vmem:[%s0 + $0x8] sm:$0xff]
    %v73 = vld [vmem:[%s0 + $0x10] sm:$0xff]
    %v74 = vld [vmem:[%s0 + $0x18] sm:$0xff]
    %v75 = vld [vmem:[%s0 + $0x20] sm:$0xff]
    %v76 = vld [vmem:[%s0 + $0x28] sm:$0xff]
    %v77 = vld [vmem:[%s0 + $0x30] sm:$0xff]
    %v78 = vld [vmem:[%s0 + $0x38] sm:$0xff]
    %v79 = vld [vmem:[%s3] sm:$0x1]
    %v80 = vld [vmem:[%s3 + $0x1] sm:$0x1]
    %v81 = vld [vmem:[%s3 + $0x2] sm:$0x1]
    %v82 = vld [vmem:[#allocation5] sm:$0xff]
    %v83 = vld [vmem:[#allocation5 + $0x8] sm:$0xff]
    %v84 = vld [vmem:[#allocation5 + $0x10] sm:$0xff]
    %v85 = vld [vmem:[#allocation5 + $0x18] sm:$0xff]
    %v86 = vld [vmem:[%s5] sm:$0x1]
    %v87 = vld [vmem:[#allocation7] sm:$0xff]
    %v88 = vld [vmem:[#allocation7 + $0x8] sm:$0xff]
    %v89 = vld [vmem:[#allocation7 + $0x10] sm:$0xff]
    %v90 = vld [vmem:[#allocation7 + $0x18] sm:$0xff]
    %s91 = sld [smem:[#allocation2]]
    %v92 = vld [vmem:[%s2] sm:$0xff]
    %v93 = vld [vmem:[%s2 + $0x8] sm:$0xff]
    %v94 = vld [vmem:[%s2 + $0x10] sm:$0xff]
    %v95 = vld [vmem:[%s2 + $0x18] sm:$0xff]
    %vm96 = vcmask 261120
    %v98 = vsel %vm96, %v71, 0
    %v101 = vsel %vm96, %v72, 0
    %v104 = vsel %vm96, %v73, 0
    %v107 = vsel %vm96, %v74, 0
    %v110 = vsel %vm96, %v75, 0
    %v113 = vsel %vm96, %v76, 0
    %v116 = vsel %vm96, %v77, 0
    %v119 = vsel %vm96, %v78, 0
    %121 = vmatprep.subr.mxu0 0.0
    %122 = vmatpush1.msra.mxu0 0.0
    %123 = vmatprep.subr.mxu0 0.0
    %124 = vmatpush1.msra.mxu0 0.0
    %125 = vmatprep.subr.mxu0 0.0
    %126 = vmatpush1.msra.mxu0 0.0
    %127 = vmatprep.subr.mxu0 0.0
    %128 = vmatpush1.msra.mxu0 0.0
    %129 = vmatprep.subr.mxu0 0.0
    %130 = vmatpush1.msra.mxu0 0.0
    %131 = vmatprep.subr.mxu0 0.0
    %132 = vmatpush1.msra.mxu0 0.0
    %133 = vmatprep.subr.mxu0 0.0
    %134 = vmatpush1.msra.mxu0 0.0
    %135 = vmatprep.subr.mxu0 0.0
    %136 = vmatpush1.msra.mxu0 0.0
    %137 = vmatprep.subr.mxu0 0.0
    %138 = vmatpush1.msra.mxu0 0.0
    %139 = vmatprep.subr.mxu0 0.0
    %140 = vmatpush1.msra.mxu0 0.0
    %141 = vmatprep.subr.mxu0 0.0
    %142 = vmatpush1.msra.mxu0 0.0
    %143 = vmatprep.subr.mxu0 0.0
    %144 = vmatpush1.msra.mxu0 0.0
    %145 = vmatprep.subr.mxu0 0.0
    %146 = vmatpush1.msra.mxu0 %v95
    %147 = vmatprep.subr.mxu0 0.0
    %148 = vmatpush1.msra.mxu0 %v94
    %149 = vmatprep.subr.mxu0 0.0
    %150 = vmatpush1.msra.mxu0 %v93
    %151 = vmatprep.subr.mxu0 0.0
    %152 = vmatpush1.msra.mxu0 %v92
    %153 = vmatprep.subr.mxu0 0.0
    %154 = vmatpush2.msra.mxu0 0.0
    %155 = vmatprep.subr.mxu0 0.0
    %156 = vmatpush2.msra.mxu0 0.0
    %157 = vmatprep.subr.mxu0 0.0
    %158 = vmatpush2.msra.mxu0 0.0
    %159 = vmatprep.subr.mxu0 0.0
    %160 = vmatpush2.msra.mxu0 0.0
    %161 = vmatprep.subr.mxu0 0.0
    %162 = vmatpush2.msra.mxu0 0.0
    %163 = vmatprep.subr.mxu0 0.0
    %164 = vmatpush2.msra.mxu0 0.0
    %165 = vmatprep.subr.mxu0 0.0
    %166 = vmatpush2.msra.mxu0 0.0
    %167 = vmatprep.subr.mxu0 0.0
    %168 = vmatpush2.msra.mxu0 0.0
    %169 = vmatprep.subr.mxu0 0.0
    %170 = vmatpush2.msra.mxu0 0.0
    %171 = vmatprep.subr.mxu0 0.0
    %172 = vmatpush2.msra.mxu0 0.0
    %173 = vmatprep.subr.mxu0 0.0
    %174 = vmatpush2.msra.mxu0 0.0
    %175 = vmatprep.subr.mxu0 0.0
    %176 = vmatpush2.msra.mxu0 0.0
    %177 = vmatprep.subr.mxu0 0.0
    %178 = vmatpush2.msra.mxu0 0.0
    %179 = vmatprep.subr.mxu0 0.0
    %180 = vmatpush2.msra.mxu0 0.0
    %181 = vmatprep.subr.mxu0 0.0
    %182 = vmatpush2.msra.mxu0 0.0
    %183 = vmatprep.subr.mxu0 0.0
    %184 = vmatpush2.msra.mxu0 0.0
    %185 = vmatprep.mubr.f32.mxu0 0.0
    %186 = vmatmul.mubr.f32.gmra.mxu0 %v98
    %v187 = vpop.f32.mrf.mxu0
    %v188 = vadd.f32 0.0, %v187
    %v189 = vpop.f32.mrf.mxu0
    %190 = vmatprep.mubr.f32.mxu0 0.0
    %191 = vmatmul.mubr.f32.gmra.mxu0 %v101
    %v192 = vpop.f32.mrf.mxu0
    %v193 = vadd.f32 0.0, %v192
    %v194 = vpop.f32.mrf.mxu0
    %195 = vmatprep.mubr.f32.mxu0 0.0
    %196 = vmatmul.mubr.f32.gmra.mxu0 %v104
    %v197 = vpop.f32.mrf.mxu0
    %v198 = vadd.f32 0.0, %v197
    %v199 = vpop.f32.mrf.mxu0
    %200 = vmatprep.mubr.f32.mxu0 0.0
    %201 = vmatmul.mubr.f32.gmra.mxu0 %v107
    %v202 = vpop.f32.mrf.mxu0
    %v203 = vadd.f32 0.0, %v202
    %v204 = vpop.f32.mrf.mxu0
    %205 = vmatprep.mubr.f32.mxu0 0.0
    %206 = vmatmul.mubr.f32.gmra.mxu0 %v110
    %v207 = vpop.f32.mrf.mxu0
    %v208 = vadd.f32 0.0, %v207
    %v209 = vpop.f32.mrf.mxu0
    %210 = vmatprep.mubr.f32.mxu0 0.0
    %211 = vmatmul.mubr.f32.gmra.mxu0 %v113
    %v212 = vpop.f32.mrf.mxu0
    %v213 = vadd.f32 0.0, %v212
    %v214 = vpop.f32.mrf.mxu0
    %215 = vmatprep.mubr.f32.mxu0 0.0
    %216 = vmatmul.mubr.f32.gmra.mxu0 %v116
    %v217 = vpop.f32.mrf.mxu0
    %v218 = vadd.f32 0.0, %v217
    %v219 = vpop.f32.mrf.mxu0
    %220 = vmatprep.mubr.f32.mxu0 0.0
    %221 = vmatmul.mubr.f32.gmra.mxu0 %v119
    %v222 = vpop.f32.mrf.mxu0
    %v223 = vadd.f32 0.0, %v222
    %v224 = vpop.f32.mrf.mxu0
    %225 = vdwg.mxu0
    %v226 = vld [vmem:[#allocation3] sm:$0xff]
    %v227 = vld [vmem:[#allocation3 + $0x8] sm:$0xff]
    %v228 = vld [vmem:[#allocation3 + $0x10] sm:$0xff]
    %v229 = vld [vmem:[#allocation3 + $0x18] sm:$0xff]
    %v230 = vld [vmem:[#allocation3 + $0x20] sm:$0xff]
    %v231 = vld [vmem:[#allocation3 + $0x28] sm:$0xff]
    %v232 = vld [vmem:[#allocation3 + $0x30] sm:$0xff]
    %v233 = vld [vmem:[#allocation3 + $0x38] sm:$0xff]
    %v235 = vlaneseq
    %v236 = vshrl.u32 %v235, 7
    %v237 = vsub.s32 0, %v236
    %v238 = vrot.slane %v79, %v237
    %vm240 = vcmask 523264
    %v242 = vsel %vm240, %v226, 0
    %v245 = vsel %vm240, %v227, 0
    %v248 = vsel %vm240, %v228, 0
    %v251 = vsel %vm240, %v229, 0
    %v254 = vsel %vm240, %v230, 0
    %v257 = vsel %vm240, %v231, 0
    %v260 = vsel %vm240, %v232, 0
    %v263 = vsel %vm240, %v233, 0
    %265 = vmatprep.subr.mxu0 0.0
    %266 = vmatpush1.msra.mxu0 0.0
    %267 = vmatprep.subr.mxu0 0.0
    %268 = vmatpush1.msra.mxu0 0.0
    %269 = vmatprep.subr.mxu0 0.0
    %270 = vmatpush1.msra.mxu0 0.0
    %271 = vmatprep.subr.mxu0 0.0
    %272 = vmatpush1.msra.mxu0 0.0
    %273 = vmatprep.subr.mxu0 0.0
    %274 = vmatpush1.msra.mxu0 0.0
    %275 = vmatprep.subr.mxu0 0.0
    %276 = vmatpush1.msra.mxu0 0.0
    %277 = vmatprep.subr.mxu0 0.0
    %278 = vmatpush1.msra.mxu0 0.0
    %279 = vmatprep.subr.mxu0 0.0
    %280 = vmatpush1.msra.mxu0 0.0
    %281 = vmatprep.subr.mxu0 0.0
    %282 = vmatpush1.msra.mxu0 %v223
    %283 = vmatprep.subr.mxu0 0.0
    %284 = vmatpush1.msra.mxu0 %v218
    %285 = vmatprep.subr.mxu0 0.0
    %286 = vmatpush1.msra.mxu0 %v213
    %287 = vmatprep.subr.mxu0 0.0
    %288 = vmatpush1.msra.mxu0 %v208
    %289 = vmatprep.subr.mxu0 0.0
    %290 = vmatpush1.msra.mxu0 %v203
    %291 = vmatprep.subr.mxu0 0.0
    %292 = vmatpush1.msra.mxu0 %v198
    %293 = vmatprep.subr.mxu0 0.0
    %294 = vmatpush1.msra.mxu0 %v193
    %295 = vmatprep.subr.mxu0 0.0
    %296 = vmatpush1.msra.mxu0 %v188
    %297 = vmatprep.subr.mxu0 0.0
    %298 = vmatpush2.msra.mxu0 0.0
    %299 = vmatprep.subr.mxu0 0.0
    %300 = vmatpush2.msra.mxu0 0.0
    %301 = vmatprep.subr.mxu0 0.0
    %302 = vmatpush2.msra.mxu0 0.0
    %303 = vmatprep.subr.mxu0 0.0
    %304 = vmatpush2.msra.mxu0 0.0
    %305 = vmatprep.subr.mxu0 0.0
    %306 = vmatpush2.msra.mxu0 0.0
    %307 = vmatprep.subr.mxu0 0.0
    %308 = vmatpush2.msra.mxu0 0.0
    %309 = vmatprep.subr.mxu0 0.0
    %310 = vmatpush2.msra.mxu0 0.0
    %311 = vmatprep.subr.mxu0 0.0
    %312 = vmatpush2.msra.mxu0 0.0
    %313 = vmatprep.subr.mxu0 0.0
    %314 = vmatpush2.msra.mxu0 0.0
    %315 = vmatprep.subr.mxu0 0.0
    %316 = vmatpush2.msra.mxu0 0.0
    %317 = vmatprep.subr.mxu0 0.0
    %318 = vmatpush2.msra.mxu0 0.0
    %319 = vmatprep.subr.mxu0 0.0
    %320 = vmatpush2.msra.mxu0 0.0
    %321 = vmatprep.subr.mxu0 0.0
    %322 = vmatpush2.msra.mxu0 0.0
    %323 = vmatprep.subr.mxu0 0.0
    %324 = vmatpush2.msra.mxu0 0.0
    %325 = vmatprep.subr.mxu0 0.0
    %326 = vmatpush2.msra.mxu0 0.0
    %327 = vmatprep.subr.mxu0 0.0
    %328 = vmatpush2.msra.mxu0 0.0
    %329 = vmatprep.mubr.f32.mxu0 0.0
    %330 = vmatmul.mubr.f32.gmra.mxu0 %v242
    %v331 = vpop.f32.mrf.mxu0
    %v332 = vadd.f32 %v238, %v331
    %v333 = vpop.f32.mrf.mxu0
    %334 = vmatprep.mubr.f32.mxu0 0.0
    %335 = vmatmul.mubr.f32.gmra.mxu0 %v245
    %v336 = vpop.f32.mrf.mxu0
    %v337 = vadd.f32 %v238, %v336
    %v338 = vpop.f32.mrf.mxu0
    %339 = vmatprep.mubr.f32.mxu0 0.0
    %340 = vmatmul.mubr.f32.gmra.mxu0 %v248
    %v341 = vpop.f32.mrf.mxu0
    %v342 = vadd.f32 %v238, %v341
    %v343 = vpop.f32.mrf.mxu0
    %344 = vmatprep.mubr.f32.mxu0 0.0
    %345 = vmatmul.mubr.f32.gmra.mxu0 %v251
    %v346 = vpop.f32.mrf.mxu0
    %v347 = vadd.f32 %v238, %v346
    %v348 = vpop.f32.mrf.mxu0
    %349 = vmatprep.mubr.f32.mxu0 0.0
    %350 = vmatmul.mubr.f32.gmra.mxu0 %v254
    %v351 = vpop.f32.mrf.mxu0
    %v352 = vadd.f32 %v238, %v351
    %v353 = vpop.f32.mrf.mxu0
    %354 = vmatprep.mubr.f32.mxu0 0.0
    %355 = vmatmul.mubr.f32.gmra.mxu0 %v257
    %v356 = vpop.f32.mrf.mxu0
    %v357 = vadd.f32 %v238, %v356
    %v358 = vpop.f32.mrf.mxu0
    %359 = vmatprep.mubr.f32.mxu0 0.0
    %360 = vmatmul.mubr.f32.gmra.mxu0 %v260
    %v361 = vpop.f32.mrf.mxu0
    %v362 = vadd.f32 %v238, %v361
    %v363 = vpop.f32.mrf.mxu0
    %364 = vmatprep.mubr.f32.mxu0 0.0
    %365 = vmatmul.mubr.f32.gmra.mxu0 %v263
    %v366 = vpop.f32.mrf.mxu0
    %v367 = vadd.f32 %v238, %v366
    %v368 = vpop.f32.mrf.mxu0
    %369 = vdwg.mxu0
    %vm370 = vcmp.gt.f32.partialorder %v332, 0.0
    %vm371 = vcmp.gt.f32.partialorder %v337, 0.0
    %vm372 = vcmp.gt.f32.partialorder %v342, 0.0
    %vm373 = vcmp.gt.f32.partialorder %v347, 0.0
    %vm374 = vcmp.gt.f32.partialorder %v352, 0.0
    %vm375 = vcmp.gt.f32.partialorder %v357, 0.0
    %vm376 = vcmp.gt.f32.partialorder %v362, 0.0
    %vm377 = vcmp.gt.f32.partialorder %v367, 0.0
    %v378 = vmul.f32 %v332, 0.25
    %v379 = vmul.f32 %v337, 0.25
    %v380 = vmul.f32 %v342, 0.25
    %v381 = vmul.f32 %v347, 0.25
    %v382 = vmul.f32 %v352, 0.25
    %v383 = vmul.f32 %v357, 0.25
    %v384 = vmul.f32 %v362, 0.25
    %v385 = vmul.f32 %v367, 0.25
    %v386 = vsel %vm370, %v332, %v378
    %v387 = vsel %vm371, %v337, %v379
    %v388 = vsel %vm372, %v342, %v380
    %v389 = vsel %vm373, %v347, %v381
    %v390 = vsel %vm374, %v352, %v382
    %v391 = vsel %vm375, %v357, %v383
    %v392 = vsel %vm376, %v362, %v384
    %v393 = vsel %vm377, %v367, %v385
    %v394 = vadd.f32 %v386, 0.0
    %v395 = vadd.f32 %v387, 0.0
    %v396 = vadd.f32 %v388, 0.0
    %v397 = vadd.f32 %v389, 0.0
    %v398 = vadd.f32 %v390, 0.0
    %v399 = vadd.f32 %v391, 0.0
    %v400 = vadd.f32 %v392, 0.0
    %v401 = vadd.f32 %v393, 0.0
    %s402 = scalar_lea.vmem %s2, 32
    %v403 = vld [vmem:[%s402] sm:$0xff]
    %v404 = vld [vmem:[%s402 + $0x8] sm:$0xff]
    %v405 = vld [vmem:[%s402 + $0x10] sm:$0xff]
    %v406 = vld [vmem:[%s402 + $0x18] sm:$0xff]
    %407 = vmatprep.subr.mxu0 0.0
    %408 = vmatpush1.msra.mxu0 0.0
    %409 = vmatprep.subr.mxu0 0.0
    %410 = vmatpush1.msra.mxu0 0.0
    %411 = vmatprep.subr.mxu0 0.0
    %412 = vmatpush1.msra.mxu0 0.0
    %413 = vmatprep.subr.mxu0 0.0
    %414 = vmatpush1.msra.mxu0 0.0
    %415 = vmatprep.subr.mxu0 0.0
    %416 = vmatpush1.msra.mxu0 0.0
    %417 = vmatprep.subr.mxu0 0.0
    %418 = vmatpush1.msra.mxu0 0.0
    %419 = vmatprep.subr.mxu0 0.0
    %420 = vmatpush1.msra.mxu0 0.0
    %421 = vmatprep.subr.mxu0 0.0
    %422 = vmatpush1.msra.mxu0 0.0
    %423 = vmatprep.subr.mxu0 0.0
    %424 = vmatpush1.msra.mxu0 0.0
    %425 = vmatprep.subr.mxu0 0.0
    %426 = vmatpush1.msra.mxu0 0.0
    %427 = vmatprep.subr.mxu0 0.0
    %428 = vmatpush1.msra.mxu0 0.0
    %429 = vmatprep.subr.mxu0 0.0
    %430 = vmatpush1.msra.mxu0 0.0
    %431 = vmatprep.subr.mxu0 0.0
    %432 = vmatpush1.msra.mxu0 %v406
    %433 = vmatprep.subr.mxu0 0.0
    %434 = vmatpush1.msra.mxu0 %v405
    %435 = vmatprep.subr.mxu0 0.0
    %436 = vmatpush1.msra.mxu0 %v404
    %437 = vmatprep.subr.mxu0 0.0
    %438 = vmatpush1.msra.mxu0 %v403
    %439 = vmatprep.subr.mxu0 0.0
    %440 = vmatpush2.msra.mxu0 0.0
    %441 = vmatprep.subr.mxu0 0.0
    %442 = vmatpush2.msra.mxu0 0.0
    %443 = vmatprep.subr.mxu0 0.0
    %444 = vmatpush2.msra.mxu0 0.0
    %445 = vmatprep.subr.mxu0 0.0
    %446 = vmatpush2.msra.mxu0 0.0
    %447 = vmatprep.subr.mxu0 0.0
    %448 = vmatpush2.msra.mxu0 0.0
    %449 = vmatprep.subr.mxu0 0.0
    %450 = vmatpush2.msra.mxu0 0.0
    %451 = vmatprep.subr.mxu0 0.0
    %452 = vmatpush2.msra.mxu0 0.0
    %453 = vmatprep.subr.mxu0 0.0
    %454 = vmatpush2.msra.mxu0 0.0
    %455 = vmatprep.subr.mxu0 0.0
    %456 = vmatpush2.msra.mxu0 0.0
    %457 = vmatprep.subr.mxu0 0.0
    %458 = vmatpush2.msra.mxu0 0.0
    %459 = vmatprep.subr.mxu0 0.0
    %460 = vmatpush2.msra.mxu0 0.0
    %461 = vmatprep.subr.mxu0 0.0
    %462 = vmatpush2.msra.mxu0 0.0
    %463 = vmatprep.subr.mxu0 0.0
    %464 = vmatpush2.msra.mxu0 0.0
    %465 = vmatprep.subr.mxu0 0.0
    %466 = vmatpush2.msra.mxu0 0.0
    %467 = vmatprep.subr.mxu0 0.0
    %468 = vmatpush2.msra.mxu0 0.0
    %469 = vmatprep.subr.mxu0 0.0
    %470 = vmatpush2.msra.mxu0 0.0
    %471 = vmatprep.mubr.f32.mxu0 0.0
    %472 = vmatmul.mubr.f32.gmra.mxu0 %v98
    %v473 = vpop.f32.mrf.mxu0
    %v474 = vadd.f32 0.0, %v473
    %v475 = vpop.f32.mrf.mxu0
    %476 = vmatprep.mubr.f32.mxu0 0.0
    %477 = vmatmul.mubr.f32.gmra.mxu0 %v101
    %v478 = vpop.f32.mrf.mxu0
    %v479 = vadd.f32 0.0, %v478
    %v480 = vpop.f32.mrf.mxu0
    %481 = vmatprep.mubr.f32.mxu0 0.0
    %482 = vmatmul.mubr.f32.gmra.mxu0 %v104
    %v483 = vpop.f32.mrf.mxu0
    %v484 = vadd.f32 0.0, %v483
    %v485 = vpop.f32.mrf.mxu0
    %486 = vmatprep.mubr.f32.mxu0 0.0
    %487 = vmatmul.mubr.f32.gmra.mxu0 %v107
    %v488 = vpop.f32.mrf.mxu0
    %v489 = vadd.f32 0.0, %v488
    %v490 = vpop.f32.mrf.mxu0
    %491 = vmatprep.mubr.f32.mxu0 0.0
    %492 = vmatmul.mubr.f32.gmra.mxu0 %v110
    %v493 = vpop.f32.mrf.mxu0
    %v494 = vadd.f32 0.0, %v493
    %v495 = vpop.f32.mrf.mxu0
    %496 = vmatprep.mubr.f32.mxu0 0.0
    %497 = vmatmul.mubr.f32.gmra.mxu0 %v113
    %v498 = vpop.f32.mrf.mxu0
    %v499 = vadd.f32 0.0, %v498
    %v500 = vpop.f32.mrf.mxu0
    %501 = vmatprep.mubr.f32.mxu0 0.0
    %502 = vmatmul.mubr.f32.gmra.mxu0 %v116
    %v503 = vpop.f32.mrf.mxu0
    %v504 = vadd.f32 0.0, %v503
    %v505 = vpop.f32.mrf.mxu0
    %506 = vmatprep.mubr.f32.mxu0 0.0
    %507 = vmatmul.mubr.f32.gmra.mxu0 %v119
    %v508 = vpop.f32.mrf.mxu0
    %v509 = vadd.f32 0.0, %v508
    %v510 = vpop.f32.mrf.mxu0
    %511 = vdwg.mxu0
    %s512 = scalar_lea.vmem [#allocation3], 64
    %v513 = vld [vmem:[%s512] sm:$0xff]
    %v514 = vld [vmem:[%s512 + $0x8] sm:$0xff]
    %v515 = vld [vmem:[%s512 + $0x10] sm:$0xff]
    %v516 = vld [vmem:[%s512 + $0x18] sm:$0xff]
    %v517 = vld [vmem:[%s512 + $0x20] sm:$0xff]
    %v518 = vld [vmem:[%s512 + $0x28] sm:$0xff]
    %v519 = vld [vmem:[%s512 + $0x30] sm:$0xff]
    %v520 = vld [vmem:[%s512 + $0x38] sm:$0xff]
    %v522 = vlaneseq
    %v523 = vshrl.u32 %v522, 7
    %v524 = vsub.s32 0, %v523
    %v525 = vrot.slane %v80, %v524
    %v528 = vsel %vm240, %v513, 0
    %v531 = vsel %vm240, %v514, 0
    %v534 = vsel %vm240, %v515, 0
    %v537 = vsel %vm240, %v516, 0
    %v540 = vsel %vm240, %v517, 0
    %v543 = vsel %vm240, %v518, 0
    %v546 = vsel %vm240, %v519, 0
    %v549 = vsel %vm240, %v520, 0
    %551 = vmatprep.subr.mxu0 0.0
    %552 = vmatpush1.msra.mxu0 0.0
    %553 = vmatprep.subr.mxu0 0.0
    %554 = vmatpush1.msra.mxu0 0.0
    %555 = vmatprep.subr.mxu0 0.0
    %556 = vmatpush1.msra.mxu0 0.0
    %557 = vmatprep.subr.mxu0 0.0
    %558 = vmatpush1.msra.mxu0 0.0
    %559 = vmatprep.subr.mxu0 0.0
    %560 = vmatpush1.msra.mxu0 0.0
    %561 = vmatprep.subr.mxu0 0.0
    %562 = vmatpush1.msra.mxu0 0.0
    %563 = vmatprep.subr.mxu0 0.0
    %564 = vmatpush1.msra.mxu0 0.0
    %565 = vmatprep.subr.mxu0 0.0
    %566 = vmatpush1.msra.mxu0 0.0
    %567 = vmatprep.subr.mxu0 0.0
    %568 = vmatpush1.msra.mxu0 %v509
    %569 = vmatprep.subr.mxu0 0.0
    %570 = vmatpush1.msra.mxu0 %v504
    %571 = vmatprep.subr.mxu0 0.0
    %572 = vmatpush1.msra.mxu0 %v499
    %573 = vmatprep.subr.mxu0 0.0
    %574 = vmatpush1.msra.mxu0 %v494
    %575 = vmatprep.subr.mxu0 0.0
    %576 = vmatpush1.msra.mxu0 %v489
    %577 = vmatprep.subr.mxu0 0.0
    %578 = vmatpush1.msra.mxu0 %v484
    %579 = vmatprep.subr.mxu0 0.0
    %580 = vmatpush1.msra.mxu0 %v479
    %581 = vmatprep.subr.mxu0 0.0
    %582 = vmatpush1.msra.mxu0 %v474
    %583 = vmatprep.subr.mxu0 0.0
    %584 = vmatpush2.msra.mxu0 0.0
    %585 = vmatprep.subr.mxu0 0.0
    %586 = vmatpush2.msra.mxu0 0.0
    %587 = vmatprep.subr.mxu0 0.0
    %588 = vmatpush2.msra.mxu0 0.0
    %589 = vmatprep.subr.mxu0 0.0
    %590 = vmatpush2.msra.mxu0 0.0
    %591 = vmatprep.subr.mxu0 0.0
    %592 = vmatpush2.msra.mxu0 0.0
    %593 = vmatprep.subr.mxu0 0.0
    %594 = vmatpush2.msra.mxu0 0.0
    %595 = vmatprep.subr.mxu0 0.0
    %596 = vmatpush2.msra.mxu0 0.0
    %597 = vmatprep.subr.mxu0 0.0
    %598 = vmatpush2.msra.mxu0 0.0
    %599 = vmatprep.subr.mxu0 0.0
    %600 = vmatpush2.msra.mxu0 0.0
    %601 = vmatprep.subr.mxu0 0.0
    %602 = vmatpush2.msra.mxu0 0.0
    %603 = vmatprep.subr.mxu0 0.0
    %604 = vmatpush2.msra.mxu0 0.0
    %605 = vmatprep.subr.mxu0 0.0
    %606 = vmatpush2.msra.mxu0 0.0
    %607 = vmatprep.subr.mxu0 0.0
    %608 = vmatpush2.msra.mxu0 0.0
    %609 = vmatprep.subr.mxu0 0.0
    %610 = vmatpush2.msra.mxu0 0.0
    %611 = vmatprep.subr.mxu0 0.0
    %612 = vmatpush2.msra.mxu0 0.0
    %613 = vmatprep.subr.mxu0 0.0
    %614 = vmatpush2.msra.mxu0 0.0
    %615 = vmatprep.mubr.f32.mxu0 0.0
    %616 = vmatmul.mubr.f32.gmra.mxu0 %v528
    %v617 = vpop.f32.mrf.mxu0
    %v618 = vadd.f32 %v525, %v617
    %v619 = vpop.f32.mrf.mxu0
    %620 = vmatprep.mubr.f32.mxu0 0.0
    %621 = vmatmul.mubr.f32.gmra.mxu0 %v531
    %v622 = vpop.f32.mrf.mxu0
    %v623 = vadd.f32 %v525, %v622
    %v624 = vpop.f32.mrf.mxu0
    %625 = vmatprep.mubr.f32.mxu0 0.0
    %626 = vmatmul.mubr.f32.gmra.mxu0 %v534
    %v627 = vpop.f32.mrf.mxu0
    %v628 = vadd.f32 %v525, %v627
    %v629 = vpop.f32.mrf.mxu0
    %630 = vmatprep.mubr.f32.mxu0 0.0
    %631 = vmatmul.mubr.f32.gmra.mxu0 %v537
    %v632 = vpop.f32.mrf.mxu0
    %v633 = vadd.f32 %v525, %v632
    %v634 = vpop.f32.mrf.mxu0
    %635 = vmatprep.mubr.f32.mxu0 0.0
    %636 = vmatmul.mubr.f32.gmra.mxu0 %v540
    %v637 = vpop.f32.mrf.mxu0
    %v638 = vadd.f32 %v525, %v637
    %v639 = vpop.f32.mrf.mxu0
    %640 = vmatprep.mubr.f32.mxu0 0.0
    %641 = vmatmul.mubr.f32.gmra.mxu0 %v543
    %v642 = vpop.f32.mrf.mxu0
    %v643 = vadd.f32 %v525, %v642
    %v644 = vpop.f32.mrf.mxu0
    %645 = vmatprep.mubr.f32.mxu0 0.0
    %646 = vmatmul.mubr.f32.gmra.mxu0 %v546
    %v647 = vpop.f32.mrf.mxu0
    %v648 = vadd.f32 %v525, %v647
    %v649 = vpop.f32.mrf.mxu0
    %650 = vmatprep.mubr.f32.mxu0 0.0
    %651 = vmatmul.mubr.f32.gmra.mxu0 %v549
    %v652 = vpop.f32.mrf.mxu0
    %v653 = vadd.f32 %v525, %v652
    %v654 = vpop.f32.mrf.mxu0
    %655 = vdwg.mxu0
    %vm656 = vcmp.gt.f32.partialorder %v618, 0.0
    %vm657 = vcmp.gt.f32.partialorder %v623, 0.0
    %vm658 = vcmp.gt.f32.partialorder %v628, 0.0
    %vm659 = vcmp.gt.f32.partialorder %v633, 0.0
    %vm660 = vcmp.gt.f32.partialorder %v638, 0.0
    %vm661 = vcmp.gt.f32.partialorder %v643, 0.0
    %vm662 = vcmp.gt.f32.partialorder %v648, 0.0
    %vm663 = vcmp.gt.f32.partialorder %v653, 0.0
    %v664 = vmul.f32 %v618, 0.25
    %v665 = vmul.f32 %v623, 0.25
    %v666 = vmul.f32 %v628, 0.25
    %v667 = vmul.f32 %v633, 0.25
    %v668 = vmul.f32 %v638, 0.25
    %v669 = vmul.f32 %v643, 0.25
    %v670 = vmul.f32 %v648, 0.25
    %v671 = vmul.f32 %v653, 0.25
    %v672 = vsel %vm656, %v618, %v664
    %v673 = vsel %vm657, %v623, %v665
    %v674 = vsel %vm658, %v628, %v666
    %v675 = vsel %vm659, %v633, %v667
    %v676 = vsel %vm660, %v638, %v668
    %v677 = vsel %vm661, %v643, %v669
    %v678 = vsel %vm662, %v648, %v670
    %v679 = vsel %vm663, %v653, %v671
    %v680 = vadd.f32 %v394, %v672
    %v681 = vadd.f32 %v395, %v673
    %v682 = vadd.f32 %v396, %v674
    %v683 = vadd.f32 %v397, %v675
    %v684 = vadd.f32 %v398, %v676
    %v685 = vadd.f32 %v399, %v677
    %v686 = vadd.f32 %v400, %v678
    %v687 = vadd.f32 %v401, %v679
    %s688 = scalar_lea.vmem %s2, 64
    %v689 = vld [vmem:[%s688] sm:$0xff]
    %v690 = vld [vmem:[%s688 + $0x8] sm:$0xff]
    %v691 = vld [vmem:[%s688 + $0x10] sm:$0xff]
    %v692 = vld [vmem:[%s688 + $0x18] sm:$0xff]
    %693 = vmatprep.subr.mxu0 0.0
    %694 = vmatpush1.msra.mxu0 0.0
    %695 = vmatprep.subr.mxu0 0.0
    %696 = vmatpush1.msra.mxu0 0.0
    %697 = vmatprep.subr.mxu0 0.0
    %698 = vmatpush1.msra.mxu0 0.0
    %699 = vmatprep.subr.mxu0 0.0
    %700 = vmatpush1.msra.mxu0 0.0
    %701 = vmatprep.subr.mxu0 0.0
    %702 = vmatpush1.msra.mxu0 0.0
    %703 = vmatprep.subr.mxu0 0.0
    %704 = vmatpush1.msra.mxu0 0.0
    %705 = vmatprep.subr.mxu0 0.0
    %706 = vmatpush1.msra.mxu0 0.0
    %707 = vmatprep.subr.mxu0 0.0
    %708 = vmatpush1.msra.mxu0 0.0
    %709 = vmatprep.subr.mxu0 0.0
    %710 = vmatpush1.msra.mxu0 0.0
    %711 = vmatprep.subr.mxu0 0.0
    %712 = vmatpush1.msra.mxu0 0.0
    %713 = vmatprep.subr.mxu0 0.0
    %714 = vmatpush1.msra.mxu0 0.0
    %715 = vmatprep.subr.mxu0 0.0
    %716 = vmatpush1.msra.mxu0 0.0
    %717 = vmatprep.subr.mxu0 0.0
    %718 = vmatpush1.msra.mxu0 %v692
    %719 = vmatprep.subr.mxu0 0.0
    %720 = vmatpush1.msra.mxu0 %v691
    %721 = vmatprep.subr.mxu0 0.0
    %722 = vmatpush1.msra.mxu0 %v690
    %723 = vmatprep.subr.mxu0 0.0
    %724 = vmatpush1.msra.mxu0 %v689
    %725 = vmatprep.subr.mxu0 0.0
    %726 = vmatpush2.msra.mxu0 0.0
    %727 = vmatprep.subr.mxu0 0.0
    %728 = vmatpush2.msra.mxu0 0.0
    %729 = vmatprep.subr.mxu0 0.0
    %730 = vmatpush2.msra.mxu0 0.0
    %731 = vmatprep.subr.mxu0 0.0
    %732 = vmatpush2.msra.mxu0 0.0
    %733 = vmatprep.subr.mxu0 0.0
    %734 = vmatpush2.msra.mxu0 0.0
    %735 = vmatprep.subr.mxu0 0.0
    %736 = vmatpush2.msra.mxu0 0.0
    %737 = vmatprep.subr.mxu0 0.0
    %738 = vmatpush2.msra.mxu0 0.0
    %739 = vmatprep.subr.mxu0 0.0
    %740 = vmatpush2.msra.mxu0 0.0
    %741 = vmatprep.subr.mxu0 0.0
    %742 = vmatpush2.msra.mxu0 0.0
    %743 = vmatprep.subr.mxu0 0.0
    %744 = vmatpush2.msra.mxu0 0.0
    %745 = vmatprep.subr.mxu0 0.0
    %746 = vmatpush2.msra.mxu0 0.0
    %747 = vmatprep.subr.mxu0 0.0
    %748 = vmatpush2.msra.mxu0 0.0
    %749 = vmatprep.subr.mxu0 0.0
    %750 = vmatpush2.msra.mxu0 0.0
    %751 = vmatprep.subr.mxu0 0.0
    %752 = vmatpush2.msra.mxu0 0.0
    %753 = vmatprep.subr.mxu0 0.0
    %754 = vmatpush2.msra.mxu0 0.0
    %755 = vmatprep.subr.mxu0 0.0
    %756 = vmatpush2.msra.mxu0 0.0
    %757 = vmatprep.mubr.f32.mxu0 0.0
    %758 = vmatmul.mubr.f32.gmra.mxu0 %v98
    %v759 = vpop.f32.mrf.mxu0
    %v760 = vadd.f32 0.0, %v759
    %v761 = vpop.f32.mrf.mxu0
    %762 = vmatprep.mubr.f32.mxu0 0.0
    %763 = vmatmul.mubr.f32.gmra.mxu0 %v101
    %v764 = vpop.f32.mrf.mxu0
    %v765 = vadd.f32 0.0, %v764
    %v766 = vpop.f32.mrf.mxu0
    %767 = vmatprep.mubr.f32.mxu0 0.0
    %768 = vmatmul.mubr.f32.gmra.mxu0 %v104
    %v769 = vpop.f32.mrf.mxu0
    %v770 = vadd.f32 0.0, %v769
    %v771 = vpop.f32.mrf.mxu0
    %772 = vmatprep.mubr.f32.mxu0 0.0
    %773 = vmatmul.mubr.f32.gmra.mxu0 %v107
    %v774 = vpop.f32.mrf.mxu0
    %v775 = vadd.f32 0.0, %v774
    %v776 = vpop.f32.mrf.mxu0
    %777 = vmatprep.mubr.f32.mxu0 0.0
    %778 = vmatmul.mubr.f32.gmra.mxu0 %v110
    %v779 = vpop.f32.mrf.mxu0
    %v780 = vadd.f32 0.0, %v779
    %v781 = vpop.f32.mrf.mxu0
    %782 = vmatprep.mubr.f32.mxu0 0.0
    %783 = vmatmul.mubr.f32.gmra.mxu0 %v113
    %v784 = vpop.f32.mrf.mxu0
    %v785 = vadd.f32 0.0, %v784
    %v786 = vpop.f32.mrf.mxu0
    %787 = vmatprep.mubr.f32.mxu0 0.0
    %788 = vmatmul.mubr.f32.gmra.mxu0 %v116
    %v789 = vpop.f32.mrf.mxu0
    %v790 = vadd.f32 0.0, %v789
    %v791 = vpop.f32.mrf.mxu0
    %792 = vmatprep.mubr.f32.mxu0 0.0
    %793 = vmatmul.mubr.f32.gmra.mxu0 %v119
    %v794 = vpop.f32.mrf.mxu0
    %v795 = vadd.f32 0.0, %v794
    %v796 = vpop.f32.mrf.mxu0
    %797 = vdwg.mxu0
    %s798 = scalar_lea.vmem [#allocation3], 128
    %v799 = vld [vmem:[%s798] sm:$0xff]
    %v800 = vld [vmem:[%s798 + $0x8] sm:$0xff]
    %v801 = vld [vmem:[%s798 + $0x10] sm:$0xff]
    %v802 = vld [vmem:[%s798 + $0x18] sm:$0xff]
    %v803 = vld [vmem:[%s798 + $0x20] sm:$0xff]
    %v804 = vld [vmem:[%s798 + $0x28] sm:$0xff]
    %v805 = vld [vmem:[%s798 + $0x30] sm:$0xff]
    %v806 = vld [vmem:[%s798 + $0x38] sm:$0xff]
    %v808 = vlaneseq
    %v809 = vshrl.u32 %v808, 7
    %v810 = vsub.s32 0, %v809
    %v811 = vrot.slane %v81, %v810
    %v814 = vsel %vm240, %v799, 0
    %v817 = vsel %vm240, %v800, 0
    %v820 = vsel %vm240, %v801, 0
    %v823 = vsel %vm240, %v802, 0
    %v826 = vsel %vm240, %v803, 0
    %v829 = vsel %vm240, %v804, 0
    %v832 = vsel %vm240, %v805, 0
    %v835 = vsel %vm240, %v806, 0
    %837 = vmatprep.subr.mxu0 0.0
    %838 = vmatpush1.msra.mxu0 0.0
    %839 = vmatprep.subr.mxu0 0.0
    %840 = vmatpush1.msra.mxu0 0.0
    %841 = vmatprep.subr.mxu0 0.0
    %842 = vmatpush1.msra.mxu0 0.0
    %843 = vmatprep.subr.mxu0 0.0
    %844 = vmatpush1.msra.mxu0 0.0
    %845 = vmatprep.subr.mxu0 0.0
    %846 = vmatpush1.msra.mxu0 0.0
    %847 = vmatprep.subr.mxu0 0.0
    %848 = vmatpush1.msra.mxu0 0.0
    %849 = vmatprep.subr.mxu0 0.0
    %850 = vmatpush1.msra.mxu0 0.0
    %851 = vmatprep.subr.mxu0 0.0
    %852 = vmatpush1.msra.mxu0 0.0
    %853 = vmatprep.subr.mxu0 0.0
    %854 = vmatpush1.msra.mxu0 %v795
    %855 = vmatprep.subr.mxu0 0.0
    %856 = vmatpush1.msra.mxu0 %v790
    %857 = vmatprep.subr.mxu0 0.0
    %858 = vmatpush1.msra.mxu0 %v785
    %859 = vmatprep.subr.mxu0 0.0
    %860 = vmatpush1.msra.mxu0 %v780
    %861 = vmatprep.subr.mxu0 0.0
    %862 = vmatpush1.msra.mxu0 %v775
    %863 = vmatprep.subr.mxu0 0.0
    %864 = vmatpush1.msra.mxu0 %v770
    %865 = vmatprep.subr.mxu0 0.0
    %866 = vmatpush1.msra.mxu0 %v765
    %867 = vmatprep.subr.mxu0 0.0
    %868 = vmatpush1.msra.mxu0 %v760
    %869 = vmatprep.subr.mxu0 0.0
    %870 = vmatpush2.msra.mxu0 0.0
    %871 = vmatprep.subr.mxu0 0.0
    %872 = vmatpush2.msra.mxu0 0.0
    %873 = vmatprep.subr.mxu0 0.0
    %874 = vmatpush2.msra.mxu0 0.0
    %875 = vmatprep.subr.mxu0 0.0
    %876 = vmatpush2.msra.mxu0 0.0
    %877 = vmatprep.subr.mxu0 0.0
    %878 = vmatpush2.msra.mxu0 0.0
    %879 = vmatprep.subr.mxu0 0.0
    %880 = vmatpush2.msra.mxu0 0.0
    %881 = vmatprep.subr.mxu0 0.0
    %882 = vmatpush2.msra.mxu0 0.0
    %883 = vmatprep.subr.mxu0 0.0
    %884 = vmatpush2.msra.mxu0 0.0
    %885 = vmatprep.subr.mxu0 0.0
    %886 = vmatpush2.msra.mxu0 0.0
    %887 = vmatprep.subr.mxu0 0.0
    %888 = vmatpush2.msra.mxu0 0.0
    %889 = vmatprep.subr.mxu0 0.0
    %890 = vmatpush2.msra.mxu0 0.0
    %891 = vmatprep.subr.mxu0 0.0
    %892 = vmatpush2.msra.mxu0 0.0
    %893 = vmatprep.subr.mxu0 0.0
    %894 = vmatpush2.msra.mxu0 0.0
    %895 = vmatprep.subr.mxu0 0.0
    %896 = vmatpush2.msra.mxu0 0.0
    %897 = vmatprep.subr.mxu0 0.0
    %898 = vmatpush2.msra.mxu0 0.0
    %899 = vmatprep.subr.mxu0 0.0
    %900 = vmatpush2.msra.mxu0 0.0
    %901 = vmatprep.mubr.f32.mxu0 0.0
    %902 = vmatmul.mubr.f32.gmra.mxu0 %v814
    %v903 = vpop.f32.mrf.mxu0
    %v904 = vadd.f32 %v811, %v903
    %v905 = vpop.f32.mrf.mxu0
    %906 = vmatprep.mubr.f32.mxu0 0.0
    %907 = vmatmul.mubr.f32.gmra.mxu0 %v817
    %v908 = vpop.f32.mrf.mxu0
    %v909 = vadd.f32 %v811, %v908
    %v910 = vpop.f32.mrf.mxu0
    %911 = vmatprep.mubr.f32.mxu0 0.0
    %912 = vmatmul.mubr.f32.gmra.mxu0 %v820
    %v913 = vpop.f32.mrf.mxu0
    %v914 = vadd.f32 %v811, %v913
    %v915 = vpop.f32.mrf.mxu0
    %916 = vmatprep.mubr.f32.mxu0 0.0
    %917 = vmatmul.mubr.f32.gmra.mxu0 %v823
    %v918 = vpop.f32.mrf.mxu0
    %v919 = vadd.f32 %v811, %v918
    %v920 = vpop.f32.mrf.mxu0
    %921 = vmatprep.mubr.f32.mxu0 0.0
    %922 = vmatmul.mubr.f32.gmra.mxu0 %v826
    %v923 = vpop.f32.mrf.mxu0
    %v924 = vadd.f32 %v811, %v923
    %v925 = vpop.f32.mrf.mxu0
    %926 = vmatprep.mubr.f32.mxu0 0.0
    %927 = vmatmul.mubr.f32.gmra.mxu0 %v829
    %v928 = vpop.f32.mrf.mxu0
    %v929 = vadd.f32 %v811, %v928
    %v930 = vpop.f32.mrf.mxu0
    %931 = vmatprep.mubr.f32.mxu0 0.0
    %932 = vmatmul.mubr.f32.gmra.mxu0 %v832
    %v933 = vpop.f32.mrf.mxu0
    %v934 = vadd.f32 %v811, %v933
    %v935 = vpop.f32.mrf.mxu0
    %936 = vmatprep.mubr.f32.mxu0 0.0
    %937 = vmatmul.mubr.f32.gmra.mxu0 %v835
    %v938 = vpop.f32.mrf.mxu0
    %v939 = vadd.f32 %v811, %v938
    %v940 = vpop.f32.mrf.mxu0
    %941 = vdwg.mxu0
    %vm942 = vcmp.gt.f32.partialorder %v904, 0.0
    %vm943 = vcmp.gt.f32.partialorder %v909, 0.0
    %vm944 = vcmp.gt.f32.partialorder %v914, 0.0
    %vm945 = vcmp.gt.f32.partialorder %v919, 0.0
    %vm946 = vcmp.gt.f32.partialorder %v924, 0.0
    %vm947 = vcmp.gt.f32.partialorder %v929, 0.0
    %vm948 = vcmp.gt.f32.partialorder %v934, 0.0
    %vm949 = vcmp.gt.f32.partialorder %v939, 0.0
    %v950 = vmul.f32 %v904, 0.25
    %v951 = vmul.f32 %v909, 0.25
    %v952 = vmul.f32 %v914, 0.25
    %v953 = vmul.f32 %v919, 0.25
    %v954 = vmul.f32 %v924, 0.25
    %v955 = vmul.f32 %v929, 0.25
    %v956 = vmul.f32 %v934, 0.25
    %v957 = vmul.f32 %v939, 0.25
    %v958 = vsel %vm942, %v904, %v950
    %v959 = vsel %vm943, %v909, %v951
    %v960 = vsel %vm944, %v914, %v952
    %v961 = vsel %vm945, %v919, %v953
    %v962 = vsel %vm946, %v924, %v954
    %v963 = vsel %vm947, %v929, %v955
    %v964 = vsel %vm948, %v934, %v956
    %v965 = vsel %vm949, %v939, %v957
    %v966 = vadd.f32 %v680, %v958
    %v967 = vadd.f32 %v681, %v959
    %v968 = vadd.f32 %v682, %v960
    %v969 = vadd.f32 %v683, %v961
    %v970 = vadd.f32 %v684, %v962
    %v971 = vadd.f32 %v685, %v963
    %v972 = vadd.f32 %v686, %v964
    %v973 = vadd.f32 %v687, %v965
    %v974 = vmul.f32 %v966, 0.33333334
    %v975 = vmul.f32 %v967, 0.33333334
    %v976 = vmul.f32 %v968, 0.33333334
    %v977 = vmul.f32 %v969, 0.33333334
    %v978 = vmul.f32 %v970, 0.33333334
    %v979 = vmul.f32 %v971, 0.33333334
    %v980 = vmul.f32 %v972, 0.33333334
    %v981 = vmul.f32 %v973, 0.33333334
    %v983 = vsel %vm96, %v974, 0
    %v986 = vsel %vm96, %v975, 0
    %v989 = vsel %vm96, %v976, 0
    %v992 = vsel %vm96, %v977, 0
    %v995 = vsel %vm96, %v978, 0
    %v998 = vsel %vm96, %v979, 0
    %v1001 = vsel %vm96, %v980, 0
    %v1004 = vsel %vm96, %v981, 0
    %1006 = vmatprep.subr.mxu0 0.0
    %1007 = vmatpush1.msra.mxu0 0.0
    %1008 = vmatprep.subr.mxu0 0.0
    %1009 = vmatpush1.msra.mxu0 0.0
    %1010 = vmatprep.subr.mxu0 0.0
    %1011 = vmatpush1.msra.mxu0 0.0
    %1012 = vmatprep.subr.mxu0 0.0
    %1013 = vmatpush1.msra.mxu0 0.0
    %1014 = vmatprep.subr.mxu0 0.0
    %1015 = vmatpush1.msra.mxu0 0.0
    %1016 = vmatprep.subr.mxu0 0.0
    %1017 = vmatpush1.msra.mxu0 0.0
    %1018 = vmatprep.subr.mxu0 0.0
    %1019 = vmatpush1.msra.mxu0 0.0
    %1020 = vmatprep.subr.mxu0 0.0
    %1021 = vmatpush1.msra.mxu0 0.0
    %1022 = vmatprep.subr.mxu0 0.0
    %1023 = vmatpush1.msra.mxu0 0.0
    %1024 = vmatprep.subr.mxu0 0.0
    %1025 = vmatpush1.msra.mxu0 0.0
    %1026 = vmatprep.subr.mxu0 0.0
    %1027 = vmatpush1.msra.mxu0 0.0
    %1028 = vmatprep.subr.mxu0 0.0
    %1029 = vmatpush1.msra.mxu0 0.0
    %1030 = vmatprep.subr.mxu0 0.0
    %1031 = vmatpush1.msra.mxu0 %v85
    %1032 = vmatprep.subr.mxu0 0.0
    %1033 = vmatpush1.msra.mxu0 %v84
    %1034 = vmatprep.subr.mxu0 0.0
    %1035 = vmatpush1.msra.mxu0 %v83
    %1036 = vmatprep.subr.mxu0 0.0
    %1037 = vmatpush1.msra.mxu0 %v82
    %1038 = vmatprep.subr.mxu0 0.0
    %1039 = vmatpush2.msra.mxu0 0.0
    %1040 = vmatprep.subr.mxu0 0.0
    %1041 = vmatpush2.msra.mxu0 0.0
    %1042 = vmatprep.subr.mxu0 0.0
    %1043 = vmatpush2.msra.mxu0 0.0
    %1044 = vmatprep.subr.mxu0 0.0
    %1045 = vmatpush2.msra.mxu0 0.0
    %1046 = vmatprep.subr.mxu0 0.0
    %1047 = vmatpush2.msra.mxu0 0.0
    %1048 = vmatprep.subr.mxu0 0.0
    %1049 = vmatpush2.msra.mxu0 0.0
    %1050 = vmatprep.subr.mxu0 0.0
    %1051 = vmatpush2.msra.mxu0 0.0
    %1052 = vmatprep.subr.mxu0 0.0
    %1053 = vmatpush2.msra.mxu0 0.0
    %1054 = vmatprep.subr.mxu0 0.0
    %1055 = vmatpush2.msra.mxu0 0.0
    %1056 = vmatprep.subr.mxu0 0.0
    %1057 = vmatpush2.msra.mxu0 0.0
    %1058 = vmatprep.subr.mxu0 0.0
    %1059 = vmatpush2.msra.mxu0 0.0
    %1060 = vmatprep.subr.mxu0 0.0
    %1061 = vmatpush2.msra.mxu0 0.0
    %1062 = vmatprep.subr.mxu0 0.0
    %1063 = vmatpush2.msra.mxu0 0.0
    %1064 = vmatprep.subr.mxu0 0.0
    %1065 = vmatpush2.msra.mxu0 0.0
    %1066 = vmatprep.subr.mxu0 0.0
    %1067 = vmatpush2.msra.mxu0 0.0
    %1068 = vmatprep.subr.mxu0 0.0
    %1069 = vmatpush2.msra.mxu0 0.0
    %1070 = vmatprep.mubr.f32.mxu0 0.0
    %1071 = vmatmul.mubr.f32.gmra.mxu0 %v983
    %v1072 = vpop.f32.mrf.mxu0
    %v1073 = vadd.f32 0.0, %v1072
    %v1074 = vpop.f32.mrf.mxu0
    %1075 = vmatprep.mubr.f32.mxu0 0.0
    %1076 = vmatmul.mubr.f32.gmra.mxu0 %v986
    %v1077 = vpop.f32.mrf.mxu0
    %v1078 = vadd.f32 0.0, %v1077
    %v1079 = vpop.f32.mrf.mxu0
    %1080 = vmatprep.mubr.f32.mxu0 0.0
    %1081 = vmatmul.mubr.f32.gmra.mxu0 %v989
    %v1082 = vpop.f32.mrf.mxu0
    %v1083 = vadd.f32 0.0, %v1082
    %v1084 = vpop.f32.mrf.mxu0
    %1085 = vmatprep.mubr.f32.mxu0 0.0
    %1086 = vmatmul.mubr.f32.gmra.mxu0 %v992
    %v1087 = vpop.f32.mrf.mxu0
    %v1088 = vadd.f32 0.0, %v1087
    %v1089 = vpop.f32.mrf.mxu0
    %1090 = vmatprep.mubr.f32.mxu0 0.0
    %1091 = vmatmul.mubr.f32.gmra.mxu0 %v995
    %v1092 = vpop.f32.mrf.mxu0
    %v1093 = vadd.f32 0.0, %v1092
    %v1094 = vpop.f32.mrf.mxu0
    %1095 = vmatprep.mubr.f32.mxu0 0.0
    %1096 = vmatmul.mubr.f32.gmra.mxu0 %v998
    %v1097 = vpop.f32.mrf.mxu0
    %v1098 = vadd.f32 0.0, %v1097
    %v1099 = vpop.f32.mrf.mxu0
    %1100 = vmatprep.mubr.f32.mxu0 0.0
    %1101 = vmatmul.mubr.f32.gmra.mxu0 %v1001
    %v1102 = vpop.f32.mrf.mxu0
    %v1103 = vadd.f32 0.0, %v1102
    %v1104 = vpop.f32.mrf.mxu0
    %1105 = vmatprep.mubr.f32.mxu0 0.0
    %1106 = vmatmul.mubr.f32.gmra.mxu0 %v1004
    %v1107 = vpop.f32.mrf.mxu0
    %v1108 = vadd.f32 0.0, %v1107
    %v1109 = vpop.f32.mrf.mxu0
    %1110 = vdwg.mxu0
    %v1112 = vlaneseq
    %v1113 = vshrl.u32 %v1112, 7
    %v1114 = vsub.s32 0, %v1113
    %v1115 = vrot.slane %v86, %v1114
    %1117 = vmatprep.subr.mxu0 0.0
    %1118 = vmatpush1.msra.mxu0 0.0
    %1119 = vmatprep.subr.mxu0 0.0
    %1120 = vmatpush1.msra.mxu0 0.0
    %1121 = vmatprep.subr.mxu0 0.0
    %1122 = vmatpush1.msra.mxu0 0.0
    %1123 = vmatprep.subr.mxu0 0.0
    %1124 = vmatpush1.msra.mxu0 0.0
    %1125 = vmatprep.subr.mxu0 0.0
    %1126 = vmatpush1.msra.mxu0 0.0
    %1127 = vmatprep.subr.mxu0 0.0
    %1128 = vmatpush1.msra.mxu0 0.0
    %1129 = vmatprep.subr.mxu0 0.0
    %1130 = vmatpush1.msra.mxu0 0.0
    %1131 = vmatprep.subr.mxu0 0.0
    %1132 = vmatpush1.msra.mxu0 0.0
    %1133 = vmatprep.subr.mxu0 0.0
    %1134 = vmatpush1.msra.mxu0 %v1108
    %1135 = vmatprep.subr.mxu0 0.0
    %1136 = vmatpush1.msra.mxu0 %v1103
    %1137 = vmatprep.subr.mxu0 0.0
    %1138 = vmatpush1.msra.mxu0 %v1098
    %1139 = vmatprep.subr.mxu0 0.0
    %1140 = vmatpush1.msra.mxu0 %v1093
    %1141 = vmatprep.subr.mxu0 0.0
    %1142 = vmatpush1.msra.mxu0 %v1088
    %1143 = vmatprep.subr.mxu0 0.0
    %1144 = vmatpush1.msra.mxu0 %v1083
    %1145 = vmatprep.subr.mxu0 0.0
    %1146 = vmatpush1.msra.mxu0 %v1078
    %1147 = vmatprep.subr.mxu0 0.0
    %1148 = vmatpush1.msra.mxu0 %v1073
    %1149 = vmatprep.subr.mxu0 0.0
    %1150 = vmatpush2.msra.mxu0 0.0
    %1151 = vmatprep.subr.mxu0 0.0
    %1152 = vmatpush2.msra.mxu0 0.0
    %1153 = vmatprep.subr.mxu0 0.0
    %1154 = vmatpush2.msra.mxu0 0.0
    %1155 = vmatprep.subr.mxu0 0.0
    %1156 = vmatpush2.msra.mxu0 0.0
    %1157 = vmatprep.subr.mxu0 0.0
    %1158 = vmatpush2.msra.mxu0 0.0
    %1159 = vmatprep.subr.mxu0 0.0
    %1160 = vmatpush2.msra.mxu0 0.0
    %1161 = vmatprep.subr.mxu0 0.0
    %1162 = vmatpush2.msra.mxu0 0.0
    %1163 = vmatprep.subr.mxu0 0.0
    %1164 = vmatpush2.msra.mxu0 0.0
    %1165 = vmatprep.subr.mxu0 0.0
    %1166 = vmatpush2.msra.mxu0 0.0
    %1167 = vmatprep.subr.mxu0 0.0
    %1168 = vmatpush2.msra.mxu0 0.0
    %1169 = vmatprep.subr.mxu0 0.0
    %1170 = vmatpush2.msra.mxu0 0.0
    %1171 = vmatprep.subr.mxu0 0.0
    %1172 = vmatpush2.msra.mxu0 0.0
    %1173 = vmatprep.subr.mxu0 0.0
    %1174 = vmatpush2.msra.mxu0 0.0
    %1175 = vmatprep.subr.mxu0 0.0
    %1176 = vmatpush2.msra.mxu0 0.0
    %1177 = vmatprep.subr.mxu0 0.0
    %1178 = vmatpush2.msra.mxu0 0.0
    %1179 = vmatprep.subr.mxu0 0.0
    %1180 = vmatpush2.msra.mxu0 0.0
    %1181 = vmatprep.mubr.f32.mxu0 0.0
    %1182 = vmatmul.mubr.f32.gmra.mxu0 %v242
    %v1183 = vpop.f32.mrf.mxu0
    %v1184 = vadd.f32 %v1115, %v1183
    %v1185 = vpop.f32.mrf.mxu0
    %1186 = vmatprep.mubr.f32.mxu0 0.0
    %1187 = vmatmul.mubr.f32.gmra.mxu0 %v245
    %v1188 = vpop.f32.mrf.mxu0
    %v1189 = vadd.f32 %v1115, %v1188
    %v1190 = vpop.f32.mrf.mxu0
    %1191 = vmatprep.mubr.f32.mxu0 0.0
    %1192 = vmatmul.mubr.f32.gmra.mxu0 %v248
    %v1193 = vpop.f32.mrf.mxu0
    %v1194 = vadd.f32 %v1115, %v1193
    %v1195 = vpop.f32.mrf.mxu0
    %1196 = vmatprep.mubr.f32.mxu0 0.0
    %1197 = vmatmul.mubr.f32.gmra.mxu0 %v251
    %v1198 = vpop.f32.mrf.mxu0
    %v1199 = vadd.f32 %v1115, %v1198
    %v1200 = vpop.f32.mrf.mxu0
    %1201 = vmatprep.mubr.f32.mxu0 0.0
    %1202 = vmatmul.mubr.f32.gmra.mxu0 %v254
    %v1203 = vpop.f32.mrf.mxu0
    %v1204 = vadd.f32 %v1115, %v1203
    %v1205 = vpop.f32.mrf.mxu0
    %1206 = vmatprep.mubr.f32.mxu0 0.0
    %1207 = vmatmul.mubr.f32.gmra.mxu0 %v257
    %v1208 = vpop.f32.mrf.mxu0
    %v1209 = vadd.f32 %v1115, %v1208
    %v1210 = vpop.f32.mrf.mxu0
    %1211 = vmatprep.mubr.f32.mxu0 0.0
    %1212 = vmatmul.mubr.f32.gmra.mxu0 %v260
    %v1213 = vpop.f32.mrf.mxu0
    %v1214 = vadd.f32 %v1115, %v1213
    %v1215 = vpop.f32.mrf.mxu0
    %1216 = vmatprep.mubr.f32.mxu0 0.0
    %1217 = vmatmul.mubr.f32.gmra.mxu0 %v263
    %v1218 = vpop.f32.mrf.mxu0
    %v1219 = vadd.f32 %v1115, %v1218
    %v1220 = vpop.f32.mrf.mxu0
    %1221 = vdwg.mxu0
    %vm1222 = vcmp.gt.f32.partialorder %v1184, 0.0
    %vm1223 = vcmp.gt.f32.partialorder %v1189, 0.0
    %vm1224 = vcmp.gt.f32.partialorder %v1194, 0.0
    %vm1225 = vcmp.gt.f32.partialorder %v1199, 0.0
    %vm1226 = vcmp.gt.f32.partialorder %v1204, 0.0
    %vm1227 = vcmp.gt.f32.partialorder %v1209, 0.0
    %vm1228 = vcmp.gt.f32.partialorder %v1214, 0.0
    %vm1229 = vcmp.gt.f32.partialorder %v1219, 0.0
    %v1230 = vmul.f32 %v1184, 0.25
    %v1231 = vmul.f32 %v1189, 0.25
    %v1232 = vmul.f32 %v1194, 0.25
    %v1233 = vmul.f32 %v1199, 0.25
    %v1234 = vmul.f32 %v1204, 0.25
    %v1235 = vmul.f32 %v1209, 0.25
    %v1236 = vmul.f32 %v1214, 0.25
    %v1237 = vmul.f32 %v1219, 0.25
    %v1238 = vsel %vm1222, %v1184, %v1230
    %v1239 = vsel %vm1223, %v1189, %v1231
    %v1240 = vsel %vm1224, %v1194, %v1232
    %v1241 = vsel %vm1225, %v1199, %v1233
    %v1242 = vsel %vm1226, %v1204, %v1234
    %v1243 = vsel %vm1227, %v1209, %v1235
    %v1244 = vsel %vm1228, %v1214, %v1236
    %v1245 = vsel %vm1229, %v1219, %v1237
    %v1246 = vsel %vm96, %v1238, 0.0
    %v1247 = vsel %vm96, %v1239, 0.0
    %v1248 = vadd.f32 %v1246, %v1247
    %v1249 = vrot.slane %v1248, 4
    %v1250 = vadd.f32 %v1248, %v1249
    %v1251 = vrot.slane %v1250, 2
    %v1252 = vadd.f32 %v1250, %v1251
    %v1253 = vrot.slane %v1252, 1
    %v1254 = vadd.f32 %v1252, %v1253
    %v1255 = vrcp.pop 16.0
    %v1256 = vmul.f32 %v1254, %v1255
    %v1257 = vxor.u32 %v1256, 2147483648
    %v1258 = vmul.f32 %v1257, 1.442695
    %v1259 = vpow.pop %v1258
    %v1260 = vadd.f32 %v1259, 1.0
    %v1261 = vrcp.pop %v1260
    %v1262 = vmul.f32 1.0, %v1261
    %v1263 = vmul.f32 %v87, %v1262
    %v1264 = vmul.f32 %v88, %v1262
    %v1265 = vmul.f32 %v89, %v1262
    %v1266 = vmul.f32 %v90, %v1262
    %v1267 = vsel %vm96, %v1263, 0.0
    %1268 = vadd.xlane.f32.xlu0 %v1267
    %v1269 = vpop.xlane.xlu0 %1268
    %v1270 = vsel %vm96, %v1264, 0.0
    %1271 = vadd.xlane.f32.xlu0 %v1270
    %v1272 = vpop.xlane.xlu0 %1271
    %v1273 = vsel %vm96, %v1265, 0.0
    %1274 = vadd.xlane.f32.xlu0 %v1273
    %v1275 = vpop.xlane.xlu0 %1274
    %v1276 = vsel %vm96, %v1266, 0.0
    %1277 = vadd.xlane.f32.xlu0 %v1276
    %v1278 = vpop.xlane.xlu0 %1277
    %v1279 = vstv %s91
    %v1281 = vsel %vm96, %v1238, 0
    %v1284 = vsel %vm96, %v1239, 0
    %v1287 = vsel %vm96, %v1240, 0
    %v1290 = vsel %vm96, %v1241, 0
    %1292 = vmatprep.subr.mxu0 0.0
    %1293 = vmatpush1.msra.mxu0 0.0
    %1294 = vmatprep.subr.mxu0 0.0
    %1295 = vmatpush1.msra.mxu0 0.0
    %1296 = vmatprep.subr.mxu0 0.0
    %1297 = vmatpush1.msra.mxu0 0.0
    %1298 = vmatprep.subr.mxu0 0.0
    %1299 = vmatpush1.msra.mxu0 0.0
    %1300 = vmatprep.subr.mxu0 0.0
    %1301 = vmatpush1.msra.mxu0 0.0
    %1302 = vmatprep.subr.mxu0 0.0
    %1303 = vmatpush1.msra.mxu0 0.0
    %1304 = vmatprep.subr.mxu0 0.0
    %1305 = vmatpush1.msra.mxu0 0.0
    %1306 = vmatprep.subr.mxu0 0.0
    %1307 = vmatpush1.msra.mxu0 0.0
    %1308 = vmatprep.subr.mxu0 0.0
    %1309 = vmatpush1.msra.mxu0 0.0
    %1310 = vmatprep.subr.mxu0 0.0
    %1311 = vmatpush1.msra.mxu0 0.0
    %1312 = vmatprep.subr.mxu0 0.0
    %1313 = vmatpush1.msra.mxu0 0.0
    %1314 = vmatprep.subr.mxu0 0.0
    %1315 = vmatpush1.msra.mxu0 0.0
    %1316 = vmatprep.subr.mxu0 0.0
    %1317 = vmatpush1.msra.mxu0 %v1278
    %1318 = vmatprep.subr.mxu0 0.0
    %1319 = vmatpush1.msra.mxu0 %v1275
    %1320 = vmatprep.subr.mxu0 0.0
    %1321 = vmatpush1.msra.mxu0 %v1272
    %1322 = vmatprep.subr.mxu0 0.0
    %1323 = vmatpush1.msra.mxu0 %v1269
    %1324 = vmatprep.subr.mxu0 0.0
    %1325 = vmatpush2.msra.mxu0 0.0
    %1326 = vmatprep.subr.mxu0 0.0
    %1327 = vmatpush2.msra.mxu0 0.0
    %1328 = vmatprep.subr.mxu0 0.0
    %1329 = vmatpush2.msra.mxu0 0.0
    %1330 = vmatprep.subr.mxu0 0.0
    %1331 = vmatpush2.msra.mxu0 0.0
    %1332 = vmatprep.subr.mxu0 0.0
    %1333 = vmatpush2.msra.mxu0 0.0
    %1334 = vmatprep.subr.mxu0 0.0
    %1335 = vmatpush2.msra.mxu0 0.0
    %1336 = vmatprep.subr.mxu0 0.0
    %1337 = vmatpush2.msra.mxu0 0.0
    %1338 = vmatprep.subr.mxu0 0.0
    %1339 = vmatpush2.msra.mxu0 0.0
    %1340 = vmatprep.subr.mxu0 0.0
    %1341 = vmatpush2.msra.mxu0 0.0
    %1342 = vmatprep.subr.mxu0 0.0
    %1343 = vmatpush2.msra.mxu0 0.0
    %1344 = vmatprep.subr.mxu0 0.0
    %1345 = vmatpush2.msra.mxu0 0.0
    %1346 = vmatprep.subr.mxu0 0.0
    %1347 = vmatpush2.msra.mxu0 0.0
    %1348 = vmatprep.subr.mxu0 0.0
    %1349 = vmatpush2.msra.mxu0 0.0
    %1350 = vmatprep.subr.mxu0 0.0
    %1351 = vmatpush2.msra.mxu0 0.0
    %1352 = vmatprep.subr.mxu0 0.0
    %1353 = vmatpush2.msra.mxu0 0.0
    %1354 = vmatprep.subr.mxu0 0.0
    %1355 = vmatpush2.msra.mxu0 0.0
    %1356 = vmatprep.mubr.f32.mxu0 0.0
    %1357 = vmatmul.mubr.f32.gmra.mxu0 %v1281
    %v1358 = vpop.f32.mrf.mxu0
    %v1359 = vadd.f32 %v1279, %v1358
    %v1360 = vpop.f32.mrf.mxu0
    %1361 = vmatprep.mubr.f32.mxu0 0.0
    %1362 = vmatmul.mubr.f32.gmra.mxu0 %v1284
    %v1363 = vpop.f32.mrf.mxu0
    %v1364 = vadd.f32 %v1279, %v1363
    %v1365 = vpop.f32.mrf.mxu0
    %1366 = vmatprep.mubr.f32.mxu0 0.0
    %1367 = vmatmul.mubr.f32.gmra.mxu0 %v1287
    %v1368 = vpop.f32.mrf.mxu0
    %v1369 = vadd.f32 %v1279, %v1368
    %v1370 = vpop.f32.mrf.mxu0
    %1371 = vmatprep.mubr.f32.mxu0 0.0
    %1372 = vmatmul.mubr.f32.gmra.mxu0 %v1290
    %v1373 = vpop.f32.mrf.mxu0
    %v1374 = vadd.f32 %v1279, %v1373
    %v1375 = vpop.f32.mrf.mxu0
    %1376 = vdwg.mxu0
    %vm1377 = vcmask 7168
    %1378 = vst.msk [vmem:[%s8] sm:$0xff] %vm1377, %v1359
    %1379 = vst.msk [vmem:[%s8 + $0x8] sm:$0xff] %vm1377, %v1364
    %1380 = vst.msk [vmem:[%s8 + $0x10] sm:$0xff] %vm1377, %v1369
    %1381 = vst.msk [vmem:[%s8 + $0x18] sm:$0xff] %vm1377, %v1374
    %v1382 = vsel %vm96, %v1242, 0.0
    %v1383 = vsel %vm96, %v1243, 0.0
    %v1384 = vadd.f32 %v1382, %v1383
    %v1385 = vrot.slane %v1384, 4
    %v1386 = vadd.f32 %v1384, %v1385
    %v1387 = vrot.slane %v1386, 2
    %v1388 = vadd.f32 %v1386, %v1387
    %v1389 = vrot.slane %v1388, 1
    %v1390 = vadd.f32 %v1388, %v1389
    %v1391 = vmul.f32 %v1390, %v1255
    %v1392 = vxor.u32 %v1391, 2147483648
    %v1393 = vmul.f32 %v1392, 1.442695
    %v1394 = vpow.pop %v1393
    %v1395 = vadd.f32 %v1394, 1.0
    %v1396 = vrcp.pop %v1395
    %v1397 = vmul.f32 1.0, %v1396
    %v1398 = vmul.f32 %v87, %v1397
    %v1399 = vmul.f32 %v88, %v1397
    %v1400 = vmul.f32 %v89, %v1397
    %v1401 = vmul.f32 %v90, %v1397
    %v1402 = vsel %vm96, %v1398, 0.0
    %1403 = vadd.xlane.f32.xlu0 %v1402
    %v1404 = vpop.xlane.xlu0 %1403
    %v1405 = vsel %vm96, %v1399, 0.0
    %1406 = vadd.xlane.f32.xlu0 %v1405
    %v1407 = vpop.xlane.xlu0 %1406
    %v1408 = vsel %vm96, %v1400, 0.0
    %1409 = vadd.xlane.f32.xlu0 %v1408
    %v1410 = vpop.xlane.xlu0 %1409
    %v1411 = vsel %vm96, %v1401, 0.0
    %1412 = vadd.xlane.f32.xlu0 %v1411
    %v1413 = vpop.xlane.xlu0 %1412
    %v1415 = vsel %vm96, %v1242, 0
    %v1418 = vsel %vm96, %v1243, 0
    %v1421 = vsel %vm96, %v1244, 0
    %v1424 = vsel %vm96, %v1245, 0
    %1426 = vmatprep.subr.mxu0 0.0
    %1427 = vmatpush1.msra.mxu0 0.0
    %1428 = vmatprep.subr.mxu0 0.0
    %1429 = vmatpush1.msra.mxu0 0.0
    %1430 = vmatprep.subr.mxu0 0.0
    %1431 = vmatpush1.msra.mxu0 0.0
    %1432 = vmatprep.subr.mxu0 0.0
    %1433 = vmatpush1.msra.mxu0 0.0
    %1434 = vmatprep.subr.mxu0 0.0
    %1435 = vmatpush1.msra.mxu0 0.0
    %1436 = vmatprep.subr.mxu0 0.0
    %1437 = vmatpush1.msra.mxu0 0.0
    %1438 = vmatprep.subr.mxu0 0.0
    %1439 = vmatpush1.msra.mxu0 0.0
    %1440 = vmatprep.subr.mxu0 0.0
    %1441 = vmatpush1.msra.mxu0 0.0
    %1442 = vmatprep.subr.mxu0 0.0
    %1443 = vmatpush1.msra.mxu0 0.0
    %1444 = vmatprep.subr.mxu0 0.0
    %1445 = vmatpush1.msra.mxu0 0.0
    %1446 = vmatprep.subr.mxu0 0.0
    %1447 = vmatpush1.msra.mxu0 0.0
    %1448 = vmatprep.subr.mxu0 0.0
    %1449 = vmatpush1.msra.mxu0 0.0
    %1450 = vmatprep.subr.mxu0 0.0
    %1451 = vmatpush1.msra.mxu0 %v1413
    %1452 = vmatprep.subr.mxu0 0.0
    %1453 = vmatpush1.msra.mxu0 %v1410
    %1454 = vmatprep.subr.mxu0 0.0
    %1455 = vmatpush1.msra.mxu0 %v1407
    %1456 = vmatprep.subr.mxu0 0.0
    %1457 = vmatpush1.msra.mxu0 %v1404
    %1458 = vmatprep.subr.mxu0 0.0
    %1459 = vmatpush2.msra.mxu0 0.0
    %1460 = vmatprep.subr.mxu0 0.0
    %1461 = vmatpush2.msra.mxu0 0.0
    %1462 = vmatprep.subr.mxu0 0.0
    %1463 = vmatpush2.msra.mxu0 0.0
    %1464 = vmatprep.subr.mxu0 0.0
    %1465 = vmatpush2.msra.mxu0 0.0
    %1466 = vmatprep.subr.mxu0 0.0
    %1467 = vmatpush2.msra.mxu0 0.0
    %1468 = vmatprep.subr.mxu0 0.0
    %1469 = vmatpush2.msra.mxu0 0.0
    %1470 = vmatprep.subr.mxu0 0.0
    %1471 = vmatpush2.msra.mxu0 0.0
    %1472 = vmatprep.subr.mxu0 0.0
    %1473 = vmatpush2.msra.mxu0 0.0
    %1474 = vmatprep.subr.mxu0 0.0
    %1475 = vmatpush2.msra.mxu0 0.0
    %1476 = vmatprep.subr.mxu0 0.0
    %1477 = vmatpush2.msra.mxu0 0.0
    %1478 = vmatprep.subr.mxu0 0.0
    %1479 = vmatpush2.msra.mxu0 0.0
    %1480 = vmatprep.subr.mxu0 0.0
    %1481 = vmatpush2.msra.mxu0 0.0
    %1482 = vmatprep.subr.mxu0 0.0
    %1483 = vmatpush2.msra.mxu0 0.0
    %1484 = vmatprep.subr.mxu0 0.0
    %1485 = vmatpush2.msra.mxu0 0.0
    %1486 = vmatprep.subr.mxu0 0.0
    %1487 = vmatpush2.msra.mxu0 0.0
    %1488 = vmatprep.subr.mxu0 0.0
    %1489 = vmatpush2.msra.mxu0 0.0
    %1490 = vmatprep.mubr.f32.mxu0 0.0
    %1491 = vmatmul.mubr.f32.gmra.mxu0 %v1415
    %v1492 = vpop.f32.mrf.mxu0
    %v1493 = vadd.f32 %v1279, %v1492
    %v1494 = vpop.f32.mrf.mxu0
    %1495 = vmatprep.mubr.f32.mxu0 0.0
    %1496 = vmatmul.mubr.f32.gmra.mxu0 %v1418
    %v1497 = vpop.f32.mrf.mxu0
    %v1498 = vadd.f32 %v1279, %v1497
    %v1499 = vpop.f32.mrf.mxu0
    %1500 = vmatprep.mubr.f32.mxu0 0.0
    %1501 = vmatmul.mubr.f32.gmra.mxu0 %v1421
    %v1502 = vpop.f32.mrf.mxu0
    %v1503 = vadd.f32 %v1279, %v1502
    %v1504 = vpop.f32.mrf.mxu0
    %1505 = vmatprep.mubr.f32.mxu0 0.0
    %1506 = vmatmul.mubr.f32.gmra.mxu0 %v1424
    %v1507 = vpop.f32.mrf.mxu0
    %v1508 = vadd.f32 %v1279, %v1507
    %v1509 = vpop.f32.mrf.mxu0
    %1510 = vdwg.mxu0
    %s1511 = scalar_lea.vmem %s8, 32
    %1512 = vst.msk [vmem:[%s1511] sm:$0xff] %vm1377, %v1493
    %1513 = vst.msk [vmem:[%s1511 + $0x8] sm:$0xff] %vm1377, %v1498
    %1514 = vst.msk [vmem:[%s1511 + $0x10] sm:$0xff] %vm1377, %v1503
    %1515 = vst.msk [vmem:[%s1511 + $0x18] sm:$0xff] %vm1377, %v1508
    // Predicated region
    $region46: #{tpu_custom_call.1} parent=1 // pred_check
      _
    $region47: #{tpu_custom_call.1} parent=1 // pred_check_branch
      %1517 = sbr.rel (0) target = $region49
    $region48: #{tpu_custom_call.1} parent=1 // pred_region
      _
    $region49: #{tpu_custom_call.1} parent=1 // pred_fallthru
      _
    // Predicated region
    $region50: #{tpu_custom_call.1} parent=1 // pred_check
      _
    $region51: #{tpu_custom_call.1} parent=1 // pred_check_branch
      %1519 = sbr.rel (0) target = $region53
    $region52: #{tpu_custom_call.1} parent=1 // pred_region
      _
    $region53: #{tpu_custom_call.1} parent=1 // pred_fallthru
      _
    %1520 = vsyncpa [#allocation4], 1
    %1521 = vsyncpa [#allocation6], 1

</llo_original>
